<compile_context>
chip_gen: v6e
topology: v6e:2x2x1
jax: 0.10.0
libtpu: 0.0.40
codegen_flags: <defaults>
</compile_context>

<pallas_src>
import math

import jax
import jax.numpy as jnp
from jax.experimental import pallas as pl
from jax.experimental.pallas import tpu as pltpu

d_k = d_v = 32
d_model = 116
n_heads = 4
d_ff = 116

LN_EPS = 1e-5           # PyTorch nn.LayerNorm default

DP = 128                # d_model padded to lane width
DFFP = 128              # d_ff padded to lane width
HD = n_heads * d_k      # 128 (already lane aligned)


def _masked_layernorm(x, gamma, beta, mask, n_real):
    """LayerNorm over the first n_real lanes of a zero-padded (M, DP) f32 tile.

    Pad lanes of x / gamma / beta are zero, so sums over all DP lanes equal sums
    over the real lanes; centered values are re-masked before the variance.
    """
    mu = jnp.sum(x, axis=-1, keepdims=True) * (1.0 / n_real)
    xc = (x - mu) * mask
    var = jnp.sum(xc * xc, axis=-1, keepdims=True) * (1.0 / n_real)
    return xc * jax.lax.rsqrt(var + LN_EPS) * gamma + beta


def encoder_layer_kernel(
    x_ref,
    wqkv_ref, bqkv_ref,
    wo_ref, bo_ref, g1_ref, be1_ref,
    w1_ref, b1_ref, w2_ref, b2_ref, g2_ref, be2_ref,
    out_ref, attn_ref,
    ctx_ref,
):
    TB, S, Dp = x_ref.shape
    M = TB * S

    x = x_ref[...].reshape(M, Dp)             # (M, 128) f32, pad lanes are zero
    x_bf = x.astype(jnp.bfloat16)

    lane = jax.lax.broadcasted_iota(jnp.int32, (1, Dp), 1)
    mask = (lane < d_model).astype(jnp.float32)

    # --- fused QKV projection: one bf16 MXU matmul, f32 accumulate ---
    qkv = jnp.dot(x_bf, wqkv_ref[...], preferred_element_type=jnp.float32) + bqkv_ref[...]
    qkv_bf = qkv.astype(jnp.bfloat16)

    scale = 1.0 / math.sqrt(float(d_k))

    # --- per-head scaled dot-product attention, batched over the TB sequences ---
    attn_parts = []
    for h in range(n_heads):                  # static 4-iteration loop, unrolled at trace
        qh = qkv_bf[:, h * d_k:(h + 1) * d_k].reshape(TB, S, d_k)
        kh = qkv_bf[:, HD + h * d_k: HD + (h + 1) * d_k].reshape(TB, S, d_k)
        vh = qkv_bf[:, 2 * HD + h * d_v: 2 * HD + (h + 1) * d_v].reshape(TB, S, d_v)

        # bf16 inputs, f32 accumulation (single-pass MXU path)
        s = jnp.einsum("bqd,bkd->bqk", qh, kh,
                       preferred_element_type=jnp.float32) * scale
        s = s - jnp.max(s, axis=-1, keepdims=True)
        e = jnp.exp(s)
        a = e * pl.reciprocal(jnp.sum(e, axis=-1, keepdims=True), approx=True)
        attn_parts.append(a)

        ctx_h = jnp.einsum("bqk,bkd->bqd", a.astype(jnp.bfloat16), vh,
                           preferred_element_type=jnp.float32)
        # write head context straight into its 32-lane slice of the (M, 128) scratch
        ctx_ref[:, h * d_v:(h + 1) * d_v] = ctx_h.reshape(M, d_v)

    # single wide store of attention probabilities: (TB, S, H*S), heads along lanes
    attn_ref[...] = jnp.concatenate(attn_parts, axis=-1)

    context = ctx_ref[...]                    # (M, 128) f32

    # --- output projection + residual + LayerNorm (masked over 116 real lanes) ---
    attn_out = jnp.dot(context.astype(jnp.bfloat16), wo_ref[...],
                       preferred_element_type=jnp.float32) + bo_ref[...]
    y = _masked_layernorm(attn_out + x, g1_ref[...], be1_ref[...], mask, float(d_model))

    # --- position-wise FFN (1x1 convs == per-position linears) ---
    h1 = jnp.maximum(
        jnp.dot(y.astype(jnp.bfloat16), w1_ref[...],
                preferred_element_type=jnp.float32) + b1_ref[...], 0.0)
    z = jnp.dot(h1.astype(jnp.bfloat16), w2_ref[...],
                preferred_element_type=jnp.float32) + b2_ref[...]
    out = _masked_layernorm(z + y, g2_ref[...], be2_ref[...], mask, float(d_model))

    out_ref[...] = out.reshape(TB, S, Dp)


def _pad_to(w, shape):
    pads = [(0, t - s) for s, t in zip(w.shape, shape)]
    return jnp.pad(w, pads)


def _choose_block_b(B, S):
    """Batch tile: ~1024 matmul rows per step, VMEM-capped, >=2 grid steps when possible."""
    target_rows = 1024
    tb = max(1, target_rows // max(S, 1))
    # x + out (f32, 128 lanes) + attn (f32, H*S per row) blocks per batch element; the
    # pipeline double-buffers them, so keep one buffer set under ~6 MiB.
    per_b_bytes = 2 * S * DP * 4 + n_heads * S * S * 4
    tb = min(tb, max(1, (6 << 20) // per_b_bytes))
    tb = min(tb, B)
    if tb >= B and B > 1:       # >=2 grid steps so v7x's two TensorCores both get work
        tb = (B + 1) // 2
    return max(1, tb)


def encoder_layer(x, params, *, block_b=None):
    """x: (B, S, d_model) f32. Returns (enc_outputs (B,S,d_model), attn (B,H,S,S))."""
    B, S, D = x.shape
    assert D == d_model

    TB = block_b if block_b is not None else _choose_block_b(B, S)
    Bp = ((B + TB - 1) // TB) * TB
    HS = n_heads * S

    # zero-pad batch (to a multiple of TB) and feature dim (to 128 lanes)
    xp = jnp.pad(x.astype(jnp.float32), ((0, Bp - B), (0, 0), (0, DP - D)))

    bf = jnp.bfloat16
    # fused QKV weight (128, 384) and bias (1, 384); pad rows/cols with zeros
    wqkv = _pad_to(jnp.concatenate([params["wq"], params["wk"], params["wv"]], axis=1),
                   (DP, 3 * HD)).astype(bf)
    bqkv = jnp.concatenate([params["bq"], params["bk"], params["bv"]], axis=1)
    wo = _pad_to(params["wo"], (HD, DP)).astype(bf)
    bo = _pad_to(params["bo"], (1, DP))
    g1 = _pad_to(params["g1"], (1, DP))
    be1 = _pad_to(params["be1"], (1, DP))
    w1 = _pad_to(params["w1"], (DP, DFFP)).astype(bf)
    b1 = _pad_to(params["b1"], (1, DFFP))
    w2 = _pad_to(params["w2"], (DFFP, DP)).astype(bf)
    b2 = _pad_to(params["b2"], (1, DP))
    g2 = _pad_to(params["g2"], (1, DP))
    be2 = _pad_to(params["be2"], (1, DP))

    weights = [wqkv, bqkv, wo, bo, g1, be1, w1, b1, w2, b2, g2, be2]

    def wspec(w):
        zeros = (0,) * w.ndim
        return pl.BlockSpec(w.shape, lambda b, _z=zeros: _z)

    in_specs = [pl.BlockSpec((TB, S, DP), lambda b: (b, 0, 0))] + [wspec(w) for w in weights]
    out_specs = (
        pl.BlockSpec((TB, S, DP), lambda b: (b, 0, 0)),
        pl.BlockSpec((TB, S, HS), lambda b: (b, 0, 0)),
    )
    out_shape = (
        jax.ShapeDtypeStruct((Bp, S, DP), jnp.float32),
        jax.ShapeDtypeStruct((Bp, S, HS), jnp.float32),
    )

    fn = pl.pallas_call(
        encoder_layer_kernel,
        grid_spec=pltpu.PrefetchScalarGridSpec(
            num_scalar_prefetch=0,
            grid=(Bp // TB,),
            in_specs=in_specs,
            out_specs=out_specs,
            scratch_shapes=[pltpu.VMEM((TB * S, HD), jnp.float32)],
        ),
        out_shape=out_shape,
        compiler_params=pltpu.CompilerParams(
            dimension_semantics=("parallel",),
            vmem_limit_bytes=32 * 1024 * 1024,
        ),
    )
    out_p, attn_p = fn(xp, *weights)

    out = out_p[:B, :, :d_model]
    # (Bp, S, H*S) slab -> (B, H, S, S); reshape/transpose outside the kernel is free in XLA
    attn = attn_p.reshape(Bp, S, n_heads, S).transpose(0, 2, 1, 3)[:B]
    return out, attn


def init_params(key):
    """Deterministic synthetic weights (shapes match the PyTorch module)."""
    ks = jax.random.split(key, 8)
    scale = 0.05
    p = {
        # MultiHeadAttention: W_Q/W_K/W_V: Linear(d_model -> n_heads*d_k)
        "wq": scale * jax.random.normal(ks[0], (d_model, n_heads * d_k), jnp.float32),
        "bq": scale * jax.random.normal(ks[1], (1, n_heads * d_k), jnp.float32),
        "wk": scale * jax.random.normal(ks[2], (d_model, n_heads * d_k), jnp.float32),
        "bk": scale * jax.random.normal(ks[3], (1, n_heads * d_k), jnp.float32),
        "wv": scale * jax.random.normal(ks[4], (d_model, n_heads * d_v), jnp.float32),
        "bv": scale * jax.random.normal(ks[5], (1, n_heads * d_v), jnp.float32),
        # output Linear(n_heads*d_v -> d_model)
        "wo": scale * jax.random.normal(ks[6], (n_heads * d_v, d_model), jnp.float32),
        "bo": scale * jax.random.normal(ks[7], (1, d_model), jnp.float32),
        # LayerNorm 1
        "g1": jnp.ones((1, d_model), jnp.float32),
        "be1": jnp.zeros((1, d_model), jnp.float32),
        # FFN: conv1 (d_model -> d_ff, k=1) stored as [in, out]; conv2 likewise.
        "w1": scale * jax.random.normal(jax.random.PRNGKey(101), (d_model, d_ff), jnp.float32),
        "b1": scale * jax.random.normal(jax.random.PRNGKey(102), (1, d_ff), jnp.float32),
        "w2": scale * jax.random.normal(jax.random.PRNGKey(103), (d_ff, d_model), jnp.float32),
        "b2": scale * jax.random.normal(jax.random.PRNGKey(104), (1, d_model), jnp.float32),
        # LayerNorm 2
        "g2": jnp.ones((1, d_model), jnp.float32),
        "be2": jnp.zeros((1, d_model), jnp.float32),
    }
    return p


def encoder_layer_ref(x, p):
    """Pure-JAX f32 reference (mirrors the PyTorch forward) for sanity checking."""
    B, S, D = x.shape
    q = (x @ p["wq"] + p["bq"][0]).reshape(B, S, n_heads, d_k).transpose(0, 2, 1, 3)
    k = (x @ p["wk"] + p["bk"][0]).reshape(B, S, n_heads, d_k).transpose(0, 2, 1, 3)
    v = (x @ p["wv"] + p["bv"][0]).reshape(B, S, n_heads, d_v).transpose(0, 2, 1, 3)
    scores = jnp.einsum("bhqd,bhkd->bhqk", q, k) / math.sqrt(float(d_k))
    attn = jax.nn.softmax(scores, axis=-1)
    ctx = jnp.einsum("bhqk,bhkd->bhqd", attn, v).transpose(0, 2, 1, 3).reshape(B, S, n_heads * d_v)
    out = ctx @ p["wo"] + p["bo"][0]

    def ln(t, g, b):
        mu = jnp.mean(t, -1, keepdims=True)
        var = jnp.mean((t - mu) ** 2, -1, keepdims=True)
        return (t - mu) / jnp.sqrt(var + LN_EPS) * g + b

    y = ln(out + x, p["g1"][0], p["be1"][0])
    h1 = jnp.maximum(y @ p["w1"] + p["b1"][0], 0.0)
    z = h1 @ p["w2"] + p["b2"][0]
    return ln(z + y, p["g2"][0], p["be2"][0]), attn


if __name__ == "__main__":
    key = jax.random.PRNGKey(0)
    kx, kp = jax.random.split(key)

    B, S = 2, 8
    x = jax.random.normal(kx, (B, S, d_model), jnp.float32)
    params = init_params(kp)

    enc_out, attn = encoder_layer(x, params)
    jax.block_until_ready(enc_out)
    jax.block_until_ready(attn)

    # sanity check vs pure-JAX f32 reference (looser tolerance: matmuls run in bf16,
    # softmax denom uses the EUP approx reciprocal)
    ref_out, ref_attn = encoder_layer_ref(x, params)
    assert jnp.allclose(enc_out, ref_out, atol=5e-2, rtol=5e-2)
    assert jnp.allclose(attn, ref_attn, atol=2e-2, rtol=2e-2)

    print("KERNEL_OK")
</pallas_src>

<mosaic_0001>
module attributes {stable_mosaic.version = 11 : i64} {
  func.func @encoder_layer_kernel(%arg0: i32, %arg1: memref<1x8x128xf32, #tpu.memory_space<vmem>>, %arg2: memref<128x384xbf16, #tpu.memory_space<vmem>>, %arg3: memref<1x384xf32, #tpu.memory_space<vmem>>, %arg4: memref<128x128xbf16, #tpu.memory_space<vmem>>, %arg5: memref<1x128xf32, #tpu.memory_space<vmem>>, %arg6: memref<1x128xf32, #tpu.memory_space<vmem>>, %arg7: memref<1x128xf32, #tpu.memory_space<vmem>>, %arg8: memref<128x128xbf16, #tpu.memory_space<vmem>>, %arg9: memref<1x128xf32, #tpu.memory_space<vmem>>, %arg10: memref<128x128xbf16, #tpu.memory_space<vmem>>, %arg11: memref<1x128xf32, #tpu.memory_space<vmem>>, %arg12: memref<1x128xf32, #tpu.memory_space<vmem>>, %arg13: memref<1x128xf32, #tpu.memory_space<vmem>>, %arg14: memref<1x8x128xf32, #tpu.memory_space<vmem>>, %arg15: memref<1x8x32xf32, #tpu.memory_space<vmem>>, %arg16: memref<8x128xf32, #tpu.memory_space<vmem>>) attributes {dimension_semantics = [#tpu.dimension_semantics<parallel>], iteration_bounds = array<i64: 2>, scalar_prefetch = 0 : i64, scratch_operands = 1 : i64, tpu.core_type = #tpu.core_type<tc>, window_params = [{transform_indices = @transform_0, window_bounds = array<i64: 1, 8, 128>}, {pipeline_mode = #tpu.pipeline_mode<synchronous>, transform_indices = @transform_1, window_bounds = array<i64: 128, 384>}, {pipeline_mode = #tpu.pipeline_mode<synchronous>, transform_indices = @transform_2, window_bounds = array<i64: 1, 384>}, {pipeline_mode = #tpu.pipeline_mode<synchronous>, transform_indices = @transform_3, window_bounds = array<i64: 128, 128>}, {pipeline_mode = #tpu.pipeline_mode<synchronous>, transform_indices = @transform_4, window_bounds = array<i64: 1, 128>}, {pipeline_mode = #tpu.pipeline_mode<synchronous>, transform_indices = @transform_5, window_bounds = array<i64: 1, 128>}, {pipeline_mode = #tpu.pipeline_mode<synchronous>, transform_indices = @transform_6, window_bounds = array<i64: 1, 128>}, {pipeline_mode = #tpu.pipeline_mode<synchronous>, transform_indices = @transform_7, window_bounds = array<i64: 128, 128>}, {pipeline_mode = #tpu.pipeline_mode<synchronous>, transform_indices = @transform_8, window_bounds = array<i64: 1, 128>}, {pipeline_mode = #tpu.pipeline_mode<synchronous>, transform_indices = @transform_9, window_bounds = array<i64: 128, 128>}, {pipeline_mode = #tpu.pipeline_mode<synchronous>, transform_indices = @transform_10, window_bounds = array<i64: 1, 128>}, {pipeline_mode = #tpu.pipeline_mode<synchronous>, transform_indices = @transform_11, window_bounds = array<i64: 1, 128>}, {pipeline_mode = #tpu.pipeline_mode<synchronous>, transform_indices = @transform_12, window_bounds = array<i64: 1, 128>}, {transform_indices = @transform_13, window_bounds = array<i64: 1, 8, 128>}, {transform_indices = @transform_14, window_bounds = array<i64: 1, 8, 32>}]} {
    %c0 = arith.constant 0 : index
    %c0_0 = arith.constant 0 : index
    %c0_1 = arith.constant 0 : index
    %0 = vector.load %arg1[%c0, %c0_0, %c0_1] : memref<1x8x128xf32, #tpu.memory_space<vmem>>, vector<1x8x128xf32>
    %1 = vector.shape_cast %0 : vector<1x8x128xf32> to vector<8x128xf32>
    %2 = arith.truncf %1 : vector<8x128xf32> to vector<8x128xbf16>
    %3 = tpu.iota {dimensions = array<i32: 1>} : vector<1x128xi32>
    %c116_i32 = arith.constant 116 : i32
    %4 = vector.broadcast %c116_i32 : i32 to vector<1x128xi32>
    %5 = arith.cmpi slt, %3, %4 : vector<1x128xi32>
    %6 = arith.extui %5 : vector<1x128xi1> to vector<1x128xi32>
    %7 = arith.sitofp %6 : vector<1x128xi32> to vector<1x128xf32>
    %c0_2 = arith.constant 0 : index
    %c0_3 = arith.constant 0 : index
    %8 = vector.load %arg2[%c0_2, %c0_3] : memref<128x384xbf16, #tpu.memory_space<vmem>>, vector<128x384xbf16>
    %cst = arith.constant dense<0.000000e+00> : vector<8x384xf32>
    %9 = tpu.matmul %2, %8, %cst {dimension_numbers = #tpu.dot_dimension_numbers<[1], [0], [0], [1], [0, 0, 1, 1], [], []>} : vector<8x128xbf16>, vector<128x384xbf16>, vector<8x384xf32> -> vector<8x384xf32>
    %c0_4 = arith.constant 0 : index
    %c0_5 = arith.constant 0 : index
    %10 = vector.load %arg3[%c0_4, %c0_5] : memref<1x384xf32, #tpu.memory_space<vmem>>, vector<1x384xf32>
    %11 = vector.broadcast %10 : vector<1x384xf32> to vector<8x384xf32>
    %12 = arith.addf %9, %11 : vector<8x384xf32>
    %13 = arith.truncf %12 : vector<8x384xf32> to vector<8x384xbf16>
    %14 = vector.extract_strided_slice %13 {offsets = [0, 0], sizes = [8, 32], strides = [1, 1]} : vector<8x384xbf16> to vector<8x32xbf16>
    %15 = vector.shape_cast %14 : vector<8x32xbf16> to vector<1x8x32xbf16>
    %16 = vector.extract_strided_slice %13 {offsets = [0, 128], sizes = [8, 32], strides = [1, 1]} : vector<8x384xbf16> to vector<8x32xbf16>
    %17 = vector.shape_cast %16 : vector<8x32xbf16> to vector<1x8x32xbf16>
    %18 = vector.extract_strided_slice %13 {offsets = [0, 256], sizes = [8, 32], strides = [1, 1]} : vector<8x384xbf16> to vector<8x32xbf16>
    %19 = vector.shape_cast %18 : vector<8x32xbf16> to vector<1x8x32xbf16>
    "tpu.trace_start"() <{level = 10 : i32, message = "bqd,bkd->bqk"}> : () -> ()
    %cst_6 = arith.constant dense<0.000000e+00> : vector<1x8x8xf32>
    %20 = tpu.matmul %15, %17, %cst_6 {dimension_numbers = #tpu.dot_dimension_numbers<[2], [2], [1], [1], [0, 0, 0, 1, 1, 1], [0], [0]>} : vector<1x8x32xbf16>, vector<1x8x32xbf16>, vector<1x8x8xf32> -> vector<1x8x8xf32>
    "tpu.trace_stop"() : () -> ()
    %cst_7 = arith.constant 0.176776692 : f32
    %21 = vector.broadcast %cst_7 : f32 to vector<1x8x8xf32>
    %22 = arith.mulf %20, %21 : vector<1x8x8xf32>
    %cst_8 = arith.constant dense<0xFF800000> : vector<1x8xf32>
    %23 = vector.multi_reduction <maximumf>, %22, %cst_8 [2] : vector<1x8x8xf32> to vector<1x8xf32>
    %24 = vector.shape_cast %23 : vector<1x8xf32> to vector<1x8x1xf32>
    %25 = vector.broadcast %24 : vector<1x8x1xf32> to vector<1x8x8xf32>
    %26 = arith.subf %22, %25 : vector<1x8x8xf32>
    %27 = math.exp %26 : vector<1x8x8xf32>
    %cst_9 = arith.constant dense<0.000000e+00> : vector<1x8xf32>
    %28 = vector.multi_reduction <add>, %27, %cst_9 [2] : vector<1x8x8xf32> to vector<1x8xf32>
    %29 = vector.shape_cast %28 : vector<1x8xf32> to vector<1x8x1xf32>
    %30 = tpu.reciprocal %29 {approx = true} : vector<1x8x1xf32> -> vector<1x8x1xf32>
    %31 = vector.broadcast %30 : vector<1x8x1xf32> to vector<1x8x8xf32>
    %32 = arith.mulf %27, %31 : vector<1x8x8xf32>
    %33 = arith.truncf %32 : vector<1x8x8xf32> to vector<1x8x8xbf16>
    "tpu.trace_start"() <{level = 10 : i32, message = "bqk,bkd->bqd"}> : () -> ()
    %cst_10 = arith.constant dense<0.000000e+00> : vector<1x8x32xf32>
    %34 = tpu.matmul %33, %19, %cst_10 {dimension_numbers = #tpu.dot_dimension_numbers<[2], [1], [1], [2], [0, 0, 0, 1, 1, 2], [0], [0]>} : vector<1x8x8xbf16>, vector<1x8x32xbf16>, vector<1x8x32xf32> -> vector<1x8x32xf32>
    "tpu.trace_stop"() : () -> ()
    %35 = vector.shape_cast %34 : vector<1x8x32xf32> to vector<8x32xf32>
    %c0_11 = arith.constant 0 : index
    %c0_12 = arith.constant 0 : index
    %36 = vector.load %arg16[%c0_11, %c0_12] : memref<8x128xf32, #tpu.memory_space<vmem>>, vector<8x32xf32>
    tpu.vector_store %arg16[%c0_11, %c0_12], %35 {strides = array<i32>} : memref<8x128xf32, #tpu.memory_space<vmem>>, vector<8x32xf32>,
    %37 = vector.extract_strided_slice %13 {offsets = [0, 32], sizes = [8, 32], strides = [1, 1]} : vector<8x384xbf16> to vector<8x32xbf16>
    %38 = vector.shape_cast %37 : vector<8x32xbf16> to vector<1x8x32xbf16>
    %39 = vector.extract_strided_slice %13 {offsets = [0, 160], sizes = [8, 32], strides = [1, 1]} : vector<8x384xbf16> to vector<8x32xbf16>
    %40 = vector.shape_cast %39 : vector<8x32xbf16> to vector<1x8x32xbf16>
    %41 = vector.extract_strided_slice %13 {offsets = [0, 288], sizes = [8, 32], strides = [1, 1]} : vector<8x384xbf16> to vector<8x32xbf16>
    %42 = vector.shape_cast %41 : vector<8x32xbf16> to vector<1x8x32xbf16>
    "tpu.trace_start"() <{level = 10 : i32, message = "bqd,bkd->bqk"}> : () -> ()
    %cst_13 = arith.constant dense<0.000000e+00> : vector<1x8x8xf32>
    %43 = tpu.matmul %38, %40, %cst_13 {dimension_numbers = #tpu.dot_dimension_numbers<[2], [2], [1], [1], [0, 0, 0, 1, 1, 1], [0], [0]>} : vector<1x8x32xbf16>, vector<1x8x32xbf16>, vector<1x8x8xf32> -> vector<1x8x8xf32>
    "tpu.trace_stop"() : () -> ()
    %cst_14 = arith.constant 0.176776692 : f32
    %44 = vector.broadcast %cst_14 : f32 to vector<1x8x8xf32>
    %45 = arith.mulf %43, %44 : vector<1x8x8xf32>
    %cst_15 = arith.constant dense<0xFF800000> : vector<1x8xf32>
    %46 = vector.multi_reduction <maximumf>, %45, %cst_15 [2] : vector<1x8x8xf32> to vector<1x8xf32>
    %47 = vector.shape_cast %46 : vector<1x8xf32> to vector<1x8x1xf32>
    %48 = vector.broadcast %47 : vector<1x8x1xf32> to vector<1x8x8xf32>
    %49 = arith.subf %45, %48 : vector<1x8x8xf32>
    %50 = math.exp %49 : vector<1x8x8xf32>
    %cst_16 = arith.constant dense<0.000000e+00> : vector<1x8xf32>
    %51 = vector.multi_reduction <add>, %50, %cst_16 [2] : vector<1x8x8xf32> to vector<1x8xf32>
    %52 = vector.shape_cast %51 : vector<1x8xf32> to vector<1x8x1xf32>
    %53 = tpu.reciprocal %52 {approx = true} : vector<1x8x1xf32> -> vector<1x8x1xf32>
    %54 = vector.broadcast %53 : vector<1x8x1xf32> to vector<1x8x8xf32>
    %55 = arith.mulf %50, %54 : vector<1x8x8xf32>
    %56 = arith.truncf %55 : vector<1x8x8xf32> to vector<1x8x8xbf16>
    "tpu.trace_start"() <{level = 10 : i32, message = "bqk,bkd->bqd"}> : () -> ()
    %cst_17 = arith.constant dense<0.000000e+00> : vector<1x8x32xf32>
    %57 = tpu.matmul %56, %42, %cst_17 {dimension_numbers = #tpu.dot_dimension_numbers<[2], [1], [1], [2], [0, 0, 0, 1, 1, 2], [0], [0]>} : vector<1x8x8xbf16>, vector<1x8x32xbf16>, vector<1x8x32xf32> -> vector<1x8x32xf32>
    "tpu.trace_stop"() : () -> ()
    %58 = vector.shape_cast %57 : vector<1x8x32xf32> to vector<8x32xf32>
    %c0_18 = arith.constant 0 : index
    %c32 = arith.constant 32 : index
    %59 = vector.load %arg16[%c0_18, %c32] : memref<8x128xf32, #tpu.memory_space<vmem>>, vector<8x32xf32>
    tpu.vector_store %arg16[%c0_18, %c32], %58 {strides = array<i32>} : memref<8x128xf32, #tpu.memory_space<vmem>>, vector<8x32xf32>,
    %60 = vector.extract_strided_slice %13 {offsets = [0, 64], sizes = [8, 32], strides = [1, 1]} : vector<8x384xbf16> to vector<8x32xbf16>
    %61 = vector.shape_cast %60 : vector<8x32xbf16> to vector<1x8x32xbf16>
    %62 = vector.extract_strided_slice %13 {offsets = [0, 192], sizes = [8, 32], strides = [1, 1]} : vector<8x384xbf16> to vector<8x32xbf16>
    %63 = vector.shape_cast %62 : vector<8x32xbf16> to vector<1x8x32xbf16>
    %64 = vector.extract_strided_slice %13 {offsets = [0, 320], sizes = [8, 32], strides = [1, 1]} : vector<8x384xbf16> to vector<8x32xbf16>
    %65 = vector.shape_cast %64 : vector<8x32xbf16> to vector<1x8x32xbf16>
    "tpu.trace_start"() <{level = 10 : i32, message = "bqd,bkd->bqk"}> : () -> ()
    %cst_19 = arith.constant dense<0.000000e+00> : vector<1x8x8xf32>
    %66 = tpu.matmul %61, %63, %cst_19 {dimension_numbers = #tpu.dot_dimension_numbers<[2], [2], [1], [1], [0, 0, 0, 1, 1, 1], [0], [0]>} : vector<1x8x32xbf16>, vector<1x8x32xbf16>, vector<1x8x8xf32> -> vector<1x8x8xf32>
    "tpu.trace_stop"() : () -> ()
    %cst_20 = arith.constant 0.176776692 : f32
    %67 = vector.broadcast %cst_20 : f32 to vector<1x8x8xf32>
    %68 = arith.mulf %66, %67 : vector<1x8x8xf32>
    %cst_21 = arith.constant dense<0xFF800000> : vector<1x8xf32>
    %69 = vector.multi_reduction <maximumf>, %68, %cst_21 [2] : vector<1x8x8xf32> to vector<1x8xf32>
    %70 = vector.shape_cast %69 : vector<1x8xf32> to vector<1x8x1xf32>
    %71 = vector.broadcast %70 : vector<1x8x1xf32> to vector<1x8x8xf32>
    %72 = arith.subf %68, %71 : vector<1x8x8xf32>
    %73 = math.exp %72 : vector<1x8x8xf32>
    %cst_22 = arith.constant dense<0.000000e+00> : vector<1x8xf32>
    %74 = vector.multi_reduction <add>, %73, %cst_22 [2] : vector<1x8x8xf32> to vector<1x8xf32>
    %75 = vector.shape_cast %74 : vector<1x8xf32> to vector<1x8x1xf32>
    %76 = tpu.reciprocal %75 {approx = true} : vector<1x8x1xf32> -> vector<1x8x1xf32>
    %77 = vector.broadcast %76 : vector<1x8x1xf32> to vector<1x8x8xf32>
    %78 = arith.mulf %73, %77 : vector<1x8x8xf32>
    %79 = arith.truncf %78 : vector<1x8x8xf32> to vector<1x8x8xbf16>
    "tpu.trace_start"() <{level = 10 : i32, message = "bqk,bkd->bqd"}> : () -> ()
    %cst_23 = arith.constant dense<0.000000e+00> : vector<1x8x32xf32>
    %80 = tpu.matmul %79, %65, %cst_23 {dimension_numbers = #tpu.dot_dimension_numbers<[2], [1], [1], [2], [0, 0, 0, 1, 1, 2], [0], [0]>} : vector<1x8x8xbf16>, vector<1x8x32xbf16>, vector<1x8x32xf32> -> vector<1x8x32xf32>
    "tpu.trace_stop"() : () -> ()
    %81 = vector.shape_cast %80 : vector<1x8x32xf32> to vector<8x32xf32>
    %c0_24 = arith.constant 0 : index
    %c64 = arith.constant 64 : index
    %82 = vector.load %arg16[%c0_24, %c64] : memref<8x128xf32, #tpu.memory_space<vmem>>, vector<8x32xf32>
    tpu.vector_store %arg16[%c0_24, %c64], %81 {strides = array<i32>} : memref<8x128xf32, #tpu.memory_space<vmem>>, vector<8x32xf32>,
    %83 = vector.extract_strided_slice %13 {offsets = [0, 96], sizes = [8, 32], strides = [1, 1]} : vector<8x384xbf16> to vector<8x32xbf16>
    %84 = vector.shape_cast %83 : vector<8x32xbf16> to vector<1x8x32xbf16>
    %85 = vector.extract_strided_slice %13 {offsets = [0, 224], sizes = [8, 32], strides = [1, 1]} : vector<8x384xbf16> to vector<8x32xbf16>
    %86 = vector.shape_cast %85 : vector<8x32xbf16> to vector<1x8x32xbf16>
    %87 = vector.extract_strided_slice %13 {offsets = [0, 352], sizes = [8, 32], strides = [1, 1]} : vector<8x384xbf16> to vector<8x32xbf16>
    %88 = vector.shape_cast %87 : vector<8x32xbf16> to vector<1x8x32xbf16>
    "tpu.trace_start"() <{level = 10 : i32, message = "bqd,bkd->bqk"}> : () -> ()
    %cst_25 = arith.constant dense<0.000000e+00> : vector<1x8x8xf32>
    %89 = tpu.matmul %84, %86, %cst_25 {dimension_numbers = #tpu.dot_dimension_numbers<[2], [2], [1], [1], [0, 0, 0, 1, 1, 1], [0], [0]>} : vector<1x8x32xbf16>, vector<1x8x32xbf16>, vector<1x8x8xf32> -> vector<1x8x8xf32>
    "tpu.trace_stop"() : () -> ()
    %cst_26 = arith.constant 0.176776692 : f32
    %90 = vector.broadcast %cst_26 : f32 to vector<1x8x8xf32>
    %91 = arith.mulf %89, %90 : vector<1x8x8xf32>
    %cst_27 = arith.constant dense<0xFF800000> : vector<1x8xf32>
    %92 = vector.multi_reduction <maximumf>, %91, %cst_27 [2] : vector<1x8x8xf32> to vector<1x8xf32>
    %93 = vector.shape_cast %92 : vector<1x8xf32> to vector<1x8x1xf32>
    %94 = vector.broadcast %93 : vector<1x8x1xf32> to vector<1x8x8xf32>
    %95 = arith.subf %91, %94 : vector<1x8x8xf32>
    %96 = math.exp %95 : vector<1x8x8xf32>
    %cst_28 = arith.constant dense<0.000000e+00> : vector<1x8xf32>
    %97 = vector.multi_reduction <add>, %96, %cst_28 [2] : vector<1x8x8xf32> to vector<1x8xf32>
    %98 = vector.shape_cast %97 : vector<1x8xf32> to vector<1x8x1xf32>
    %99 = tpu.reciprocal %98 {approx = true} : vector<1x8x1xf32> -> vector<1x8x1xf32>
    %100 = vector.broadcast %99 : vector<1x8x1xf32> to vector<1x8x8xf32>
    %101 = arith.mulf %96, %100 : vector<1x8x8xf32>
    %102 = arith.truncf %101 : vector<1x8x8xf32> to vector<1x8x8xbf16>
    "tpu.trace_start"() <{level = 10 : i32, message = "bqk,bkd->bqd"}> : () -> ()
    %cst_29 = arith.constant dense<0.000000e+00> : vector<1x8x32xf32>
    %103 = tpu.matmul %102, %88, %cst_29 {dimension_numbers = #tpu.dot_dimension_numbers<[2], [1], [1], [2], [0, 0, 0, 1, 1, 2], [0], [0]>} : vector<1x8x8xbf16>, vector<1x8x32xbf16>, vector<1x8x32xf32> -> vector<1x8x32xf32>
    "tpu.trace_stop"() : () -> ()
    %104 = vector.shape_cast %103 : vector<1x8x32xf32> to vector<8x32xf32>
    %c0_30 = arith.constant 0 : index
    %c96 = arith.constant 96 : index
    %105 = vector.load %arg16[%c0_30, %c96] : memref<8x128xf32, #tpu.memory_space<vmem>>, vector<8x32xf32>
    tpu.vector_store %arg16[%c0_30, %c96], %104 {strides = array<i32>} : memref<8x128xf32, #tpu.memory_space<vmem>>, vector<8x32xf32>,
    %106 = tpu.concatenate %32, %55, %78, %101 in 2 : vector<1x8x8xf32>, vector<1x8x8xf32>, vector<1x8x8xf32>, vector<1x8x8xf32> -> vector<1x8x32xf32>
    %c0_31 = arith.constant 0 : index
    %c0_32 = arith.constant 0 : index
    %c0_33 = arith.constant 0 : index
    %107 = vector.load %arg15[%c0_31, %c0_32, %c0_33] : memref<1x8x32xf32, #tpu.memory_space<vmem>>, vector<1x8x32xf32>
    tpu.vector_store %arg15[%c0_31, %c0_32, %c0_33], %106 {strides = array<i32>} : memref<1x8x32xf32, #tpu.memory_space<vmem>>, vector<1x8x32xf32>,
    %c0_34 = arith.constant 0 : index
    %c0_35 = arith.constant 0 : index
    %108 = vector.load %arg16[%c0_34, %c0_35] : memref<8x128xf32, #tpu.memory_space<vmem>>, vector<8x128xf32>
    %109 = arith.truncf %108 : vector<8x128xf32> to vector<8x128xbf16>
    %c0_36 = arith.constant 0 : index
    %c0_37 = arith.constant 0 : index
    %110 = vector.load %arg4[%c0_36, %c0_37] : memref<128x128xbf16, #tpu.memory_space<vmem>>, vector<128x128xbf16>
    %cst_38 = arith.constant dense<0.000000e+00> : vector<8x128xf32>
    %111 = tpu.matmul %109, %110, %cst_38 {dimension_numbers = #tpu.dot_dimension_numbers<[1], [0], [0], [1], [0, 0, 1, 1], [], []>} : vector<8x128xbf16>, vector<128x128xbf16>, vector<8x128xf32> -> vector<8x128xf32>
    %c0_39 = arith.constant 0 : index
    %c0_40 = arith.constant 0 : index
    %112 = vector.load %arg5[%c0_39, %c0_40] : memref<1x128xf32, #tpu.memory_space<vmem>>, vector<1x128xf32>
    %113 = vector.broadcast %112 : vector<1x128xf32> to vector<8x128xf32>
    %114 = arith.addf %111, %113 : vector<8x128xf32>
    %115 = arith.addf %114, %1 : vector<8x128xf32>
    %c0_41 = arith.constant 0 : index
    %c0_42 = arith.constant 0 : index
    %116 = vector.load %arg6[%c0_41, %c0_42] : memref<1x128xf32, #tpu.memory_space<vmem>>, vector<1x128xf32>
    %c0_43 = arith.constant 0 : index
    %c0_44 = arith.constant 0 : index
    %117 = vector.load %arg7[%c0_43, %c0_44] : memref<1x128xf32, #tpu.memory_space<vmem>>, vector<1x128xf32>
    %cst_45 = arith.constant dense<0.000000e+00> : vector<8xf32>
    %118 = vector.multi_reduction <add>, %115, %cst_45 [1] : vector<8x128xf32> to vector<8xf32>
    %119 = vector.shape_cast %118 : vector<8xf32> to vector<8x1xf32>
    %cst_46 = arith.constant 8.620690e-03 : f32
    %120 = vector.broadcast %cst_46 : f32 to vector<8x1xf32>
    %121 = arith.mulf %119, %120 : vector<8x1xf32>
    %122 = vector.broadcast %121 : vector<8x1xf32> to vector<8x128xf32>
    %123 = arith.subf %115, %122 : vector<8x128xf32>
    %124 = vector.broadcast %7 : vector<1x128xf32> to vector<8x128xf32>
    %125 = arith.mulf %123, %124 : vector<8x128xf32>
    %126 = arith.mulf %125, %125 : vector<8x128xf32>
    %cst_47 = arith.constant dense<0.000000e+00> : vector<8xf32>
    %127 = vector.multi_reduction <add>, %126, %cst_47 [1] : vector<8x128xf32> to vector<8xf32>
    %128 = vector.shape_cast %127 : vector<8xf32> to vector<8x1xf32>
    %cst_48 = arith.constant 8.620690e-03 : f32
    %129 = vector.broadcast %cst_48 : f32 to vector<8x1xf32>
    %130 = arith.mulf %128, %129 : vector<8x1xf32>
    %cst_49 = arith.constant 9.99999974E-6 : f32
    %131 = vector.broadcast %cst_49 : f32 to vector<8x1xf32>
    %132 = arith.addf %130, %131 : vector<8x1xf32>
    %133 = math.rsqrt %132 : vector<8x1xf32>
    %134 = vector.broadcast %133 : vector<8x1xf32> to vector<8x128xf32>
    %135 = arith.mulf %125, %134 : vector<8x128xf32>
    %136 = vector.broadcast %116 : vector<1x128xf32> to vector<8x128xf32>
    %137 = arith.mulf %135, %136 : vector<8x128xf32>
    %138 = vector.broadcast %117 : vector<1x128xf32> to vector<8x128xf32>
    %139 = arith.addf %137, %138 : vector<8x128xf32>
    %140 = arith.truncf %139 : vector<8x128xf32> to vector<8x128xbf16>
    %c0_50 = arith.constant 0 : index
    %c0_51 = arith.constant 0 : index
    %141 = vector.load %arg8[%c0_50, %c0_51] : memref<128x128xbf16, #tpu.memory_space<vmem>>, vector<128x128xbf16>
    %cst_52 = arith.constant dense<0.000000e+00> : vector<8x128xf32>
    %142 = tpu.matmul %140, %141, %cst_52 {dimension_numbers = #tpu.dot_dimension_numbers<[1], [0], [0], [1], [0, 0, 1, 1], [], []>} : vector<8x128xbf16>, vector<128x128xbf16>, vector<8x128xf32> -> vector<8x128xf32>
    %c0_53 = arith.constant 0 : index
    %c0_54 = arith.constant 0 : index
    %143 = vector.load %arg9[%c0_53, %c0_54] : memref<1x128xf32, #tpu.memory_space<vmem>>, vector<1x128xf32>
    %144 = vector.broadcast %143 : vector<1x128xf32> to vector<8x128xf32>
    %145 = arith.addf %142, %144 : vector<8x128xf32>
    %cst_55 = arith.constant 0.000000e+00 : f32
    %146 = vector.broadcast %cst_55 : f32 to vector<8x128xf32>
    %147 = arith.maximumf %145, %146 : vector<8x128xf32>
    %148 = arith.truncf %147 : vector<8x128xf32> to vector<8x128xbf16>
    %c0_56 = arith.constant 0 : index
    %c0_57 = arith.constant 0 : index
    %149 = vector.load %arg10[%c0_56, %c0_57] : memref<128x128xbf16, #tpu.memory_space<vmem>>, vector<128x128xbf16>
    %cst_58 = arith.constant dense<0.000000e+00> : vector<8x128xf32>
    %150 = tpu.matmul %148, %149, %cst_58 {dimension_numbers = #tpu.dot_dimension_numbers<[1], [0], [0], [1], [0, 0, 1, 1], [], []>} : vector<8x128xbf16>, vector<128x128xbf16>, vector<8x128xf32> -> vector<8x128xf32>
    %c0_59 = arith.constant 0 : index
    %c0_60 = arith.constant 0 : index
    %151 = vector.load %arg11[%c0_59, %c0_60] : memref<1x128xf32, #tpu.memory_space<vmem>>, vector<1x128xf32>
    %152 = vector.broadcast %151 : vector<1x128xf32> to vector<8x128xf32>
    %153 = arith.addf %150, %152 : vector<8x128xf32>
    %154 = arith.addf %153, %139 : vector<8x128xf32>
    %c0_61 = arith.constant 0 : index
    %c0_62 = arith.constant 0 : index
    %155 = vector.load %arg12[%c0_61, %c0_62] : memref<1x128xf32, #tpu.memory_space<vmem>>, vector<1x128xf32>
    %c0_63 = arith.constant 0 : index
    %c0_64 = arith.constant 0 : index
    %156 = vector.load %arg13[%c0_63, %c0_64] : memref<1x128xf32, #tpu.memory_space<vmem>>, vector<1x128xf32>
    %cst_65 = arith.constant dense<0.000000e+00> : vector<8xf32>
    %157 = vector.multi_reduction <add>, %154, %cst_65 [1] : vector<8x128xf32> to vector<8xf32>
    %158 = vector.shape_cast %157 : vector<8xf32> to vector<8x1xf32>
    %cst_66 = arith.constant 8.620690e-03 : f32
    %159 = vector.broadcast %cst_66 : f32 to vector<8x1xf32>
    %160 = arith.mulf %158, %159 : vector<8x1xf32>
    %161 = vector.broadcast %160 : vector<8x1xf32> to vector<8x128xf32>
    %162 = arith.subf %154, %161 : vector<8x128xf32>
    %163 = vector.broadcast %7 : vector<1x128xf32> to vector<8x128xf32>
    %164 = arith.mulf %162, %163 : vector<8x128xf32>
    %165 = arith.mulf %164, %164 : vector<8x128xf32>
    %cst_67 = arith.constant dense<0.000000e+00> : vector<8xf32>
    %166 = vector.multi_reduction <add>, %165, %cst_67 [1] : vector<8x128xf32> to vector<8xf32>
    %167 = vector.shape_cast %166 : vector<8xf32> to vector<8x1xf32>
    %cst_68 = arith.constant 8.620690e-03 : f32
    %168 = vector.broadcast %cst_68 : f32 to vector<8x1xf32>
    %169 = arith.mulf %167, %168 : vector<8x1xf32>
    %cst_69 = arith.constant 9.99999974E-6 : f32
    %170 = vector.broadcast %cst_69 : f32 to vector<8x1xf32>
    %171 = arith.addf %169, %170 : vector<8x1xf32>
    %172 = math.rsqrt %171 : vector<8x1xf32>
    %173 = vector.broadcast %172 : vector<8x1xf32> to vector<8x128xf32>
    %174 = arith.mulf %164, %173 : vector<8x128xf32>
    %175 = vector.broadcast %155 : vector<1x128xf32> to vector<8x128xf32>
    %176 = arith.mulf %174, %175 : vector<8x128xf32>
    %177 = vector.broadcast %156 : vector<1x128xf32> to vector<8x128xf32>
    %178 = arith.addf %176, %177 : vector<8x128xf32>
    %179 = vector.shape_cast %178 : vector<8x128xf32> to vector<1x8x128xf32>
    %c0_70 = arith.constant 0 : index
    %c0_71 = arith.constant 0 : index
    %c0_72 = arith.constant 0 : index
    %180 = vector.load %arg14[%c0_70, %c0_71, %c0_72] : memref<1x8x128xf32, #tpu.memory_space<vmem>>, vector<1x8x128xf32>
    tpu.vector_store %arg14[%c0_70, %c0_71, %c0_72], %179 {strides = array<i32>} : memref<1x8x128xf32, #tpu.memory_space<vmem>>, vector<1x8x128xf32>,
    return
  }
  func.func @transform_0(%arg0: i32) -> (i32, i32, i32) {
    %c0_i32 = arith.constant 0 : i32
    %c0_i32_0 = arith.constant 0 : i32
    %c0_i32_1 = arith.constant 0 : i32
    return %arg0, %c0_i32, %c0_i32_0 : i32, i32, i32
  }
  func.func @transform_1(%arg0: i32) -> (i32, i32) {
    %c0_i32 = arith.constant 0 : i32
    %c0_i32_0 = arith.constant 0 : i32
    %c0_i32_1 = arith.constant 0 : i32
    return %c0_i32, %c0_i32_0 : i32, i32
  }
  func.func @transform_2(%arg0: i32) -> (i32, i32) {
    %c0_i32 = arith.constant 0 : i32
    %c0_i32_0 = arith.constant 0 : i32
    %c0_i32_1 = arith.constant 0 : i32
    return %c0_i32, %c0_i32_0 : i32, i32
  }
  func.func @transform_3(%arg0: i32) -> (i32, i32) {
    %c0_i32 = arith.constant 0 : i32
    %c0_i32_0 = arith.constant 0 : i32
    %c0_i32_1 = arith.constant 0 : i32
    return %c0_i32, %c0_i32_0 : i32, i32
  }
  func.func @transform_4(%arg0: i32) -> (i32, i32) {
    %c0_i32 = arith.constant 0 : i32
    %c0_i32_0 = arith.constant 0 : i32
    %c0_i32_1 = arith.constant 0 : i32
    return %c0_i32, %c0_i32_0 : i32, i32
  }
  func.func @transform_5(%arg0: i32) -> (i32, i32) {
    %c0_i32 = arith.constant 0 : i32
    %c0_i32_0 = arith.constant 0 : i32
    %c0_i32_1 = arith.constant 0 : i32
    return %c0_i32, %c0_i32_0 : i32, i32
  }
  func.func @transform_6(%arg0: i32) -> (i32, i32) {
    %c0_i32 = arith.constant 0 : i32
    %c0_i32_0 = arith.constant 0 : i32
    %c0_i32_1 = arith.constant 0 : i32
    return %c0_i32, %c0_i32_0 : i32, i32
  }
  func.func @transform_7(%arg0: i32) -> (i32, i32) {
    %c0_i32 = arith.constant 0 : i32
    %c0_i32_0 = arith.constant 0 : i32
    %c0_i32_1 = arith.constant 0 : i32
    return %c0_i32, %c0_i32_0 : i32, i32
  }
  func.func @transform_8(%arg0: i32) -> (i32, i32) {
    %c0_i32 = arith.constant 0 : i32
    %c0_i32_0 = arith.constant 0 : i32
    %c0_i32_1 = arith.constant 0 : i32
    return %c0_i32, %c0_i32_0 : i32, i32
  }
  func.func @transform_9(%arg0: i32) -> (i32, i32) {
    %c0_i32 = arith.constant 0 : i32
    %c0_i32_0 = arith.constant 0 : i32
    %c0_i32_1 = arith.constant 0 : i32
    return %c0_i32, %c0_i32_0 : i32, i32
  }
  func.func @transform_10(%arg0: i32) -> (i32, i32) {
    %c0_i32 = arith.constant 0 : i32
    %c0_i32_0 = arith.constant 0 : i32
    %c0_i32_1 = arith.constant 0 : i32
    return %c0_i32, %c0_i32_0 : i32, i32
  }
  func.func @transform_11(%arg0: i32) -> (i32, i32) {
    %c0_i32 = arith.constant 0 : i32
    %c0_i32_0 = arith.constant 0 : i32
    %c0_i32_1 = arith.constant 0 : i32
    return %c0_i32, %c0_i32_0 : i32, i32
  }
  func.func @transform_12(%arg0: i32) -> (i32, i32) {
    %c0_i32 = arith.constant 0 : i32
    %c0_i32_0 = arith.constant 0 : i32
    %c0_i32_1 = arith.constant 0 : i32
    return %c0_i32, %c0_i32_0 : i32, i32
  }
  func.func @transform_13(%arg0: i32) -> (i32, i32, i32) {
    %c0_i32 = arith.constant 0 : i32
    %c0_i32_0 = arith.constant 0 : i32
    %c0_i32_1 = arith.constant 0 : i32
    return %arg0, %c0_i32, %c0_i32_0 : i32, i32, i32
  }
  func.func @transform_14(%arg0: i32) -> (i32, i32, i32) {
    %c0_i32 = arith.constant 0 : i32
    %c0_i32_0 = arith.constant 0 : i32
    %c0_i32_1 = arith.constant 0 : i32
    return %arg0, %c0_i32, %c0_i32_0 : i32, i32, i32
  }
}

</mosaic_0001>

<llo_original>
// kernel: tpu_custom_call.1
$region0: #{tpu_custom_call.1}
  #allocation0 [shape = 'u32[]', space=smem, size = 0x4, offset = 0x4, fixed_abs, tag = 'smem constant byte address 0x4 - core index']
  #allocation1 [shape = 'u32[144,128]{1,0:T(1,128)}', space=vmem, size = 0x12000, scoped, tag = 'internal scratch']
  #allocation2 [shape = 'f32[8,128]{1,0:T(8,128)}', space=vmem, size = 0x1000, scoped, tag = 'scratch operand']
  %s0 = inlined_call_operand.hbm [shape: f32[2,8,128], index: 0, kind: input, shape index: {}]
  %s1 = inlined_call_operand.hbm [shape: bf16[128,384], index: 1, kind: input, shape index: {}]
  %s2 = inlined_call_operand.vmem [shape: f32[1,384], index: 2, kind: input, shape index: {}]
  %s3 = inlined_call_operand.hbm [shape: bf16[128,128], index: 3, kind: input, shape index: {}]
  %s4 = inlined_call_operand.vmem [shape: f32[1,128], index: 4, kind: input, shape index: {}]
  %s5 = inlined_call_operand.vmem [shape: f32[1,128], index: 5, kind: input, shape index: {}]
  %s6 = inlined_call_operand.vmem [shape: f32[1,128], index: 6, kind: input, shape index: {}]
  %s7 = inlined_call_operand.hbm [shape: bf16[128,128], index: 7, kind: input, shape index: {}]
  %s8 = inlined_call_operand.vmem [shape: f32[1,128], index: 8, kind: input, shape index: {}]
  %s9 = inlined_call_operand.hbm [shape: bf16[128,128], index: 9, kind: input, shape index: {}]
  %s10 = inlined_call_operand.vmem [shape: f32[1,128], index: 10, kind: input, shape index: {}]
  %s11 = inlined_call_operand.vmem [shape: f32[1,128], index: 11, kind: input, shape index: {}]
  %s12 = inlined_call_operand.vmem [shape: f32[1,128], index: 12, kind: input, shape index: {}]
  %s13 = inlined_call_operand.hbm [shape: f32[2,8,128], index: 13, kind: output, shape index: {0}]
  %s14 = inlined_call_operand.hbm [shape: f32[2,8,32], index: 14, kind: output, shape index: {1}]
  %15 = xla_tuple %s13, %s14
  %s16 = sld [smem:[#allocation0]]
  $region113: #{tpu_custom_call.1} parent=0
    _
  %s18 = ssub.s32 1, %s16
  %s19 = scalar_select 0, %s18, %s16
  $region1: #{tpu_custom_call.1} parent=0
    #allocation3 [shape = 'u8[8192]{0}', space=vmem, size = 0x2000, scoped, tag = 'input window, operand 0']
    #allocation4 [shape = 's32[2]{0}', space=sflag, size = 0x8, scoped, tag = 'scoped memory for tpu_custom_call.1']
    #allocation5 [shape = 's32[2]{0}', space=sflag, size = 0x8, scoped, tag = 'scoped memory for tpu_custom_call.1']
    #allocation6 [shape = 'u8[98304]{0}', space=vmem, size = 0x18000, scoped, tag = 'input window, operand 1, single buffered']
    #allocation7 [shape = 's32[1]{0}', space=sflag, size = 0x4, scoped, tag = 'scoped memory for tpu_custom_call.1']
    #allocation8 [shape = 'u8[32768]{0}', space=vmem, size = 0x8000, scoped, tag = 'input window, operand 3, single buffered']
    #allocation9 [shape = 'u8[32768]{0}', space=vmem, size = 0x8000, scoped, tag = 'input window, operand 7, single buffered']
    #allocation10 [shape = 's32[1]{0}', space=sflag, size = 0x4, scoped, tag = 'scoped memory for tpu_custom_call.1']
    #allocation11 [shape = 'u8[32768]{0}', space=vmem, size = 0x8000, scoped, tag = 'input window, operand 9, single buffered']
    #allocation12 [shape = 'u8[8192]{0}', space=vmem, size = 0x2000, scoped, tag = 'output window, operand 0']
    #allocation13 [shape = 'u8[8192]{0}', space=vmem, size = 0x2000, scoped, tag = 'output window, operand 1']
    #allocation14 [shape = 's32[2]{0}', space=sflag, size = 0x8, scoped, tag = 'scoped memory for tpu_custom_call.1']
    %20 = vsyncpa [#allocation4], 0
    %s21 = scalar_lea.sflag [#allocation4], 1
    %22 = vsyncpa %s21, 0
    %23 = vsyncpa [#allocation7], 0
    %24 = vsyncpa [#allocation10], 0
    %25 = vsyncpa [#allocation5], 0
    %s26 = scalar_lea.sflag [#allocation5], 1
    %27 = vsyncpa %s26, 0
    %28 = vsyncpa [#allocation14], 0
    %s29 = scalar_lea.sflag [#allocation14], 1
    %30 = vsyncpa %s29, 0
    loop: start=0, step=1, limit=4
    $region2: #{tpu_custom_call.1} parent=1 // loop_pre_header
      _
    $region3: #{tpu_custom_call.1} parent=1 // loop_header
      %s32 = sphi 0, %s36
      %p33 = scmp.ge.s32.totalorder %s32, 4
      %s42 = sphi 0, %s44
      %s45 = sphi 0, %s42
      %s46 = sphi 0, %s45
      %s62 = sphi 0, %s46
      %s66 = sphi 0, %s66
      %s68 = sphi 0, %s66
      %s69 = sphi 0, %s68
      %s83 = sphi 0, %s69
      %s87 = sphi 0, %s87
      %s89 = sphi 0, %s87
      %s90 = sphi 0, %s89
      %s104 = sphi 0, %s90
      %s108 = sphi 0, %s108
      %s110 = sphi 0, %s108
      %s111 = sphi 0, %s110
      %s125 = sphi 0, %s111
      %s129 = sphi 0, %s129
      %s131 = sphi 0, %s129
      %s132 = sphi 0, %s131
      %s146 = sphi 0, %s132
      %s150 = sphi 0, %s150
      %s152 = sphi 0, %s150
      %s153 = sphi 0, %s152
      %s167 = sphi 0, %s153
      %s171 = sphi 0, %s171
      %s173 = sphi 0, %s171
      %s174 = sphi 0, %s173
      %s188 = sphi 0, %s174
      %s192 = sphi 0, %s192
      %s194 = sphi 0, %s192
      %s195 = sphi 0, %s194
      %s209 = sphi 0, %s195
      %s213 = sphi 0, %s213
      %s215 = sphi 0, %s213
      %s216 = sphi 0, %s215
      %s230 = sphi 0, %s216
      %s234 = sphi 0, %s234
      %s236 = sphi 0, %s234
      %s237 = sphi 0, %s236
      %s251 = sphi 0, %s237
      %s255 = sphi 0, %s255
      %s257 = sphi 0, %s255
      %s258 = sphi 0, %s257
      %s272 = sphi 0, %s258
      %s276 = sphi 0, %s276
      %s278 = sphi 0, %s276
      %s279 = sphi 0, %s278
      %s293 = sphi 0, %s279
      %s297 = sphi 0, %s297
      %s299 = sphi 0, %s297
      %s300 = sphi 0, %s299
      %s314 = sphi 0, %s300
      %s320 = sphi 0, %s322
      %s323 = sphi 0, %s320
      %s324 = sphi 0, %s323
      %s340 = sphi 0, %s324
      %s346 = sphi 0, %s348
      %s349 = sphi 0, %s346
      %s350 = sphi 0, %s349
      %s366 = sphi 0, %s350
    $region4: #{tpu_custom_call.1} parent=1 // loop_header_branch
      %35 = sbr.rel (%p33) target = $region8
    $region5: #{tpu_custom_call.1} parent=1 // loop_body
      %s37 = ssub.s32 %s32, 1
      %s38 = ssub.s32 %s32, 2
      %s39 = sadd.s32 %s32, 1
      %s40 = ssub.s32 %s32, %s39
      %p41 = scmp.eq.s32.totalorder %s40, 0
      %s43 = sadd.s32 %s42, 1
      %s44 = scalar_select %p41, %s42, %s43
      %p47 = pneg %p41
      %p48 = scmp.eq.s32.totalorder %s32, 1
      %p49 = por %p47, %p48
      %p50 = scmp.ne.s32.totalorder %s42, %s45
      %p51 = scmp.eq.s32.totalorder %s32, 0
      %p52 = por %p50, %p51
      %p53 = scmp.ne.s32.totalorder %s42, %s45
      %p54 = scmp.eq.s32.totalorder %s37, 1
      %p55 = por %p53, %p54
      %p56 = scmp.ne.s32.totalorder %s45, %s46
      %p57 = scmp.eq.s32.totalorder %s37, 0
      %p58 = por %p56, %p57
      %p59 = scmp.ne.s32.totalorder %s45, %s46
      %p60 = scmp.eq.s32.totalorder %s38, 1
      %p61 = por %p59, %p60
      %p63 = scmp.ne.s32.totalorder %s46, %s62
      %p64 = scmp.eq.s32.totalorder %s38, 0
      %p65 = por %p63, %p64
      %s67 = sadd.s32 %s66, 1
      %p70 = scmp.eq.s32.totalorder %s32, 1
      %p71 = scmp.ne.s32.totalorder %s66, %s68
      %p72 = scmp.eq.s32.totalorder %s32, 0
      %p73 = por %p71, %p72
      %p74 = scmp.ne.s32.totalorder %s66, %s68
      %p75 = scmp.eq.s32.totalorder %s37, 1
      %p76 = por %p74, %p75
      %p77 = scmp.ne.s32.totalorder %s68, %s69
      %p78 = scmp.eq.s32.totalorder %s37, 0
      %p79 = por %p77, %p78
      %p80 = scmp.ne.s32.totalorder %s68, %s69
      %p81 = scmp.eq.s32.totalorder %s38, 1
      %p82 = por %p80, %p81
      %p84 = scmp.ne.s32.totalorder %s69, %s83
      %p85 = scmp.eq.s32.totalorder %s38, 0
      %p86 = por %p84, %p85
      %s88 = sadd.s32 %s87, 1
      %p91 = scmp.eq.s32.totalorder %s32, 1
      %p92 = scmp.ne.s32.totalorder %s87, %s89
      %p93 = scmp.eq.s32.totalorder %s32, 0
      %p94 = por %p92, %p93
      %p95 = scmp.ne.s32.totalorder %s87, %s89
      %p96 = scmp.eq.s32.totalorder %s37, 1
      %p97 = por %p95, %p96
      %p98 = scmp.ne.s32.totalorder %s89, %s90
      %p99 = scmp.eq.s32.totalorder %s37, 0
      %p100 = por %p98, %p99
      %p101 = scmp.ne.s32.totalorder %s89, %s90
      %p102 = scmp.eq.s32.totalorder %s38, 1
      %p103 = por %p101, %p102
      %p105 = scmp.ne.s32.totalorder %s90, %s104
      %p106 = scmp.eq.s32.totalorder %s38, 0
      %p107 = por %p105, %p106
      %s109 = sadd.s32 %s108, 1
      %p112 = scmp.eq.s32.totalorder %s32, 1
      %p113 = scmp.ne.s32.totalorder %s108, %s110
      %p114 = scmp.eq.s32.totalorder %s32, 0
      %p115 = por %p113, %p114
      %p116 = scmp.ne.s32.totalorder %s108, %s110
      %p117 = scmp.eq.s32.totalorder %s37, 1
      %p118 = por %p116, %p117
      %p119 = scmp.ne.s32.totalorder %s110, %s111
      %p120 = scmp.eq.s32.totalorder %s37, 0
      %p121 = por %p119, %p120
      %p122 = scmp.ne.s32.totalorder %s110, %s111
      %p123 = scmp.eq.s32.totalorder %s38, 1
      %p124 = por %p122, %p123
      %p126 = scmp.ne.s32.totalorder %s111, %s125
      %p127 = scmp.eq.s32.totalorder %s38, 0
      %p128 = por %p126, %p127
      %s130 = sadd.s32 %s129, 1
      %p133 = scmp.eq.s32.totalorder %s32, 1
      %p134 = scmp.ne.s32.totalorder %s129, %s131
      %p135 = scmp.eq.s32.totalorder %s32, 0
      %p136 = por %p134, %p135
      %p137 = scmp.ne.s32.totalorder %s129, %s131
      %p138 = scmp.eq.s32.totalorder %s37, 1
      %p139 = por %p137, %p138
      %p140 = scmp.ne.s32.totalorder %s131, %s132
      %p141 = scmp.eq.s32.totalorder %s37, 0
      %p142 = por %p140, %p141
      %p143 = scmp.ne.s32.totalorder %s131, %s132
      %p144 = scmp.eq.s32.totalorder %s38, 1
      %p145 = por %p143, %p144
      %p147 = scmp.ne.s32.totalorder %s132, %s146
      %p148 = scmp.eq.s32.totalorder %s38, 0
      %p149 = por %p147, %p148
      %s151 = sadd.s32 %s150, 1
      %p154 = scmp.eq.s32.totalorder %s32, 1
      %p155 = scmp.ne.s32.totalorder %s150, %s152
      %p156 = scmp.eq.s32.totalorder %s32, 0
      %p157 = por %p155, %p156
      %p158 = scmp.ne.s32.totalorder %s150, %s152
      %p159 = scmp.eq.s32.totalorder %s37, 1
      %p160 = por %p158, %p159
      %p161 = scmp.ne.s32.totalorder %s152, %s153
      %p162 = scmp.eq.s32.totalorder %s37, 0
      %p163 = por %p161, %p162
      %p164 = scmp.ne.s32.totalorder %s152, %s153
      %p165 = scmp.eq.s32.totalorder %s38, 1
      %p166 = por %p164, %p165
      %p168 = scmp.ne.s32.totalorder %s153, %s167
      %p169 = scmp.eq.s32.totalorder %s38, 0
      %p170 = por %p168, %p169
      %s172 = sadd.s32 %s171, 1
      %p175 = scmp.eq.s32.totalorder %s32, 1
      %p176 = scmp.ne.s32.totalorder %s171, %s173
      %p177 = scmp.eq.s32.totalorder %s32, 0
      %p178 = por %p176, %p177
      %p179 = scmp.ne.s32.totalorder %s171, %s173
      %p180 = scmp.eq.s32.totalorder %s37, 1
      %p181 = por %p179, %p180
      %p182 = scmp.ne.s32.totalorder %s173, %s174
      %p183 = scmp.eq.s32.totalorder %s37, 0
      %p184 = por %p182, %p183
      %p185 = scmp.ne.s32.totalorder %s173, %s174
      %p186 = scmp.eq.s32.totalorder %s38, 1
      %p187 = por %p185, %p186
      %p189 = scmp.ne.s32.totalorder %s174, %s188
      %p190 = scmp.eq.s32.totalorder %s38, 0
      %p191 = por %p189, %p190
      %s193 = sadd.s32 %s192, 1
      %p196 = scmp.eq.s32.totalorder %s32, 1
      %p197 = scmp.ne.s32.totalorder %s192, %s194
      %p198 = scmp.eq.s32.totalorder %s32, 0
      %p199 = por %p197, %p198
      %p200 = scmp.ne.s32.totalorder %s192, %s194
      %p201 = scmp.eq.s32.totalorder %s37, 1
      %p202 = por %p200, %p201
      %p203 = scmp.ne.s32.totalorder %s194, %s195
      %p204 = scmp.eq.s32.totalorder %s37, 0
      %p205 = por %p203, %p204
      %p206 = scmp.ne.s32.totalorder %s194, %s195
      %p207 = scmp.eq.s32.totalorder %s38, 1
      %p208 = por %p206, %p207
      %p210 = scmp.ne.s32.totalorder %s195, %s209
      %p211 = scmp.eq.s32.totalorder %s38, 0
      %p212 = por %p210, %p211
      %s214 = sadd.s32 %s213, 1
      %p217 = scmp.eq.s32.totalorder %s32, 1
      %p218 = scmp.ne.s32.totalorder %s213, %s215
      %p219 = scmp.eq.s32.totalorder %s32, 0
      %p220 = por %p218, %p219
      %p221 = scmp.ne.s32.totalorder %s213, %s215
      %p222 = scmp.eq.s32.totalorder %s37, 1
      %p223 = por %p221, %p222
      %p224 = scmp.ne.s32.totalorder %s215, %s216
      %p225 = scmp.eq.s32.totalorder %s37, 0
      %p226 = por %p224, %p225
      %p227 = scmp.ne.s32.totalorder %s215, %s216
      %p228 = scmp.eq.s32.totalorder %s38, 1
      %p229 = por %p227, %p228
      %p231 = scmp.ne.s32.totalorder %s216, %s230
      %p232 = scmp.eq.s32.totalorder %s38, 0
      %p233 = por %p231, %p232
      %s235 = sadd.s32 %s234, 1
      %p238 = scmp.eq.s32.totalorder %s32, 1
      %p239 = scmp.ne.s32.totalorder %s234, %s236
      %p240 = scmp.eq.s32.totalorder %s32, 0
      %p241 = por %p239, %p240
      %p242 = scmp.ne.s32.totalorder %s234, %s236
      %p243 = scmp.eq.s32.totalorder %s37, 1
      %p244 = por %p242, %p243
      %p245 = scmp.ne.s32.totalorder %s236, %s237
      %p246 = scmp.eq.s32.totalorder %s37, 0
      %p247 = por %p245, %p246
      %p248 = scmp.ne.s32.totalorder %s236, %s237
      %p249 = scmp.eq.s32.totalorder %s38, 1
      %p250 = por %p248, %p249
      %p252 = scmp.ne.s32.totalorder %s237, %s251
      %p253 = scmp.eq.s32.totalorder %s38, 0
      %p254 = por %p252, %p253
      %s256 = sadd.s32 %s255, 1
      %p259 = scmp.eq.s32.totalorder %s32, 1
      %p260 = scmp.ne.s32.totalorder %s255, %s257
      %p261 = scmp.eq.s32.totalorder %s32, 0
      %p262 = por %p260, %p261
      %p263 = scmp.ne.s32.totalorder %s255, %s257
      %p264 = scmp.eq.s32.totalorder %s37, 1
      %p265 = por %p263, %p264
      %p266 = scmp.ne.s32.totalorder %s257, %s258
      %p267 = scmp.eq.s32.totalorder %s37, 0
      %p268 = por %p266, %p267
      %p269 = scmp.ne.s32.totalorder %s257, %s258
      %p270 = scmp.eq.s32.totalorder %s38, 1
      %p271 = por %p269, %p270
      %p273 = scmp.ne.s32.totalorder %s258, %s272
      %p274 = scmp.eq.s32.totalorder %s38, 0
      %p275 = por %p273, %p274
      %s277 = sadd.s32 %s276, 1
      %p280 = scmp.eq.s32.totalorder %s32, 1
      %p281 = scmp.ne.s32.totalorder %s276, %s278
      %p282 = scmp.eq.s32.totalorder %s32, 0
      %p283 = por %p281, %p282
      %p284 = scmp.ne.s32.totalorder %s276, %s278
      %p285 = scmp.eq.s32.totalorder %s37, 1
      %p286 = por %p284, %p285
      %p287 = scmp.ne.s32.totalorder %s278, %s279
      %p288 = scmp.eq.s32.totalorder %s37, 0
      %p289 = por %p287, %p288
      %p290 = scmp.ne.s32.totalorder %s278, %s279
      %p291 = scmp.eq.s32.totalorder %s38, 1
      %p292 = por %p290, %p291
      %p294 = scmp.ne.s32.totalorder %s279, %s293
      %p295 = scmp.eq.s32.totalorder %s38, 0
      %p296 = por %p294, %p295
      %s298 = sadd.s32 %s297, 1
      %p301 = scmp.eq.s32.totalorder %s32, 1
      %p302 = scmp.ne.s32.totalorder %s297, %s299
      %p303 = scmp.eq.s32.totalorder %s32, 0
      %p304 = por %p302, %p303
      %p305 = scmp.ne.s32.totalorder %s297, %s299
      %p306 = scmp.eq.s32.totalorder %s37, 1
      %p307 = por %p305, %p306
      %p308 = scmp.ne.s32.totalorder %s299, %s300
      %p309 = scmp.eq.s32.totalorder %s37, 0
      %p310 = por %p308, %p309
      %p311 = scmp.ne.s32.totalorder %s299, %s300
      %p312 = scmp.eq.s32.totalorder %s38, 1
      %p313 = por %p311, %p312
      %p315 = scmp.ne.s32.totalorder %s300, %s314
      %p316 = scmp.eq.s32.totalorder %s38, 0
      %p317 = por %p315, %p316
      %s318 = ssub.s32 %s32, %s39
      %p319 = scmp.eq.s32.totalorder %s318, 0
      %s321 = sadd.s32 %s320, 1
      %s322 = scalar_select %p319, %s320, %s321
      %p325 = pneg %p319
      %p326 = scmp.eq.s32.totalorder %s32, 1
      %p327 = por %p325, %p326
      %p328 = scmp.ne.s32.totalorder %s320, %s323
      %p329 = scmp.eq.s32.totalorder %s32, 0
      %p330 = por %p328, %p329
      %p331 = scmp.ne.s32.totalorder %s320, %s323
      %p332 = scmp.eq.s32.totalorder %s37, 1
      %p333 = por %p331, %p332
      %p334 = scmp.ne.s32.totalorder %s323, %s324
      %p335 = scmp.eq.s32.totalorder %s37, 0
      %p336 = por %p334, %p335
      %p337 = scmp.ne.s32.totalorder %s323, %s324
      %p338 = scmp.eq.s32.totalorder %s38, 1
      %p339 = por %p337, %p338
      %p341 = scmp.ne.s32.totalorder %s324, %s340
      %p342 = scmp.eq.s32.totalorder %s38, 0
      %p343 = por %p341, %p342
      %s344 = ssub.s32 %s32, %s39
      %p345 = scmp.eq.s32.totalorder %s344, 0
      %s347 = sadd.s32 %s346, 1
      %s348 = scalar_select %p345, %s346, %s347
      %p351 = pneg %p345
      %p352 = scmp.eq.s32.totalorder %s32, 1
      %p353 = por %p351, %p352
      %p354 = scmp.ne.s32.totalorder %s346, %s349
      %p355 = scmp.eq.s32.totalorder %s32, 0
      %p356 = por %p354, %p355
      %p357 = scmp.ne.s32.totalorder %s346, %s349
      %p358 = scmp.eq.s32.totalorder %s37, 1
      %p359 = por %p357, %p358
      %p360 = scmp.ne.s32.totalorder %s349, %s350
      %p361 = scmp.eq.s32.totalorder %s37, 0
      %p362 = por %p360, %p361
      %p363 = scmp.ne.s32.totalorder %s349, %s350
      %p364 = scmp.eq.s32.totalorder %s38, 1
      %p365 = por %p363, %p364
      %p367 = scmp.ne.s32.totalorder %s350, %s366
      %p368 = scmp.eq.s32.totalorder %s38, 0
      %p369 = por %p367, %p368
      %p370 = scmp.le.s32.totalorder 1, %s32
      %p371 = scmp.lt.s32.totalorder %s32, 3
      %p372 = pnand %p370, %p371
      %p373 = pneg %p372
      // Predicated region
      $region9: #{tpu_custom_call.1} parent=5 // pred_check
        _
      $region10: #{tpu_custom_call.1} parent=5 // pred_check_branch
        %375 = sbr.rel (%p372) target = $region12
      $region11: #{tpu_custom_call.1} parent=5 // pred_region
        %s376 = ssub.s32 %s32, 1
        // Predicated region
        $region13: #{tpu_custom_call.1} parent=11 // pred_check
          %p377 = pneg %p79
        $region14: #{tpu_custom_call.1} parent=11 // pred_check_branch
          %379 = sbr.rel (%p377) target = $region16
        $region15: #{tpu_custom_call.1} parent=11 // pred_region
          %s381 = ssub.s32 3072, 3072
          %382 = vsyncadd [#allocation7], %s381
          %s383 = sshll.u32 [#allocation6], 4
          %s384 = int_to_ptr.vmem [resolvable:$true] %s383
          %389 = dma.hbm_to_vmem [thread:$0]  %s1, 3072, %s384, [#allocation7], 192, 192, 12
        $region16: #{tpu_custom_call.1} parent=11 // pred_fallthru
          _
        // Predicated region
        $region17: #{tpu_custom_call.1} parent=11 // pred_check
          %p390 = pneg %p100
        $region18: #{tpu_custom_call.1} parent=11 // pred_check_branch
          %392 = sbr.rel (%p390) target = $region20
        $region19: #{tpu_custom_call.1} parent=11 // pred_region
          _
        $region20: #{tpu_custom_call.1} parent=11 // pred_fallthru
          _
        // Predicated region
        $region21: #{tpu_custom_call.1} parent=11 // pred_check
          %p393 = pneg %p121
        $region22: #{tpu_custom_call.1} parent=11 // pred_check_branch
          %395 = sbr.rel (%p393) target = $region24
        $region23: #{tpu_custom_call.1} parent=11 // pred_region
          %s397 = ssub.s32 1024, 1024
          %398 = vsyncadd [#allocation7], %s397
          %s399 = sshll.u32 [#allocation8], 4
          %s400 = int_to_ptr.vmem [resolvable:$true] %s399
          %405 = dma.hbm_to_vmem [thread:$0]  %s3, 1024, %s400, [#allocation7], 64, 64, 4
        $region24: #{tpu_custom_call.1} parent=11 // pred_fallthru
          _
        // Predicated region
        $region25: #{tpu_custom_call.1} parent=11 // pred_check
          %p406 = pneg %p142
        $region26: #{tpu_custom_call.1} parent=11 // pred_check_branch
          %408 = sbr.rel (%p406) target = $region28
        $region27: #{tpu_custom_call.1} parent=11 // pred_region
          _
        $region28: #{tpu_custom_call.1} parent=11 // pred_fallthru
          _
        // Predicated region
        $region29: #{tpu_custom_call.1} parent=11 // pred_check
          %p409 = pneg %p163
        $region30: #{tpu_custom_call.1} parent=11 // pred_check_branch
          %411 = sbr.rel (%p409) target = $region32
        $region31: #{tpu_custom_call.1} parent=11 // pred_region
          _
        $region32: #{tpu_custom_call.1} parent=11 // pred_fallthru
          _
        // Predicated region
        $region33: #{tpu_custom_call.1} parent=11 // pred_check
          %p412 = pneg %p184
        $region34: #{tpu_custom_call.1} parent=11 // pred_check_branch
          %414 = sbr.rel (%p412) target = $region36
        $region35: #{tpu_custom_call.1} parent=11 // pred_region
          _
        $region36: #{tpu_custom_call.1} parent=11 // pred_fallthru
          _
        // Predicated region
        $region37: #{tpu_custom_call.1} parent=11 // pred_check
          %p415 = pneg %p205
        $region38: #{tpu_custom_call.1} parent=11 // pred_check_branch
          %417 = sbr.rel (%p415) target = $region40
        $region39: #{tpu_custom_call.1} parent=11 // pred_region
          %s419 = ssub.s32 1024, 1024
          %420 = vsyncadd [#allocation10], %s419
          %s421 = sshll.u32 [#allocation9], 4
          %s422 = int_to_ptr.vmem [resolvable:$true] %s421
          %427 = dma.hbm_to_vmem [thread:$0]  %s7, 1024, %s422, [#allocation10], 64, 64, 4
        $region40: #{tpu_custom_call.1} parent=11 // pred_fallthru
          _
        // Predicated region
        $region41: #{tpu_custom_call.1} parent=11 // pred_check
          %p428 = pneg %p226
        $region42: #{tpu_custom_call.1} parent=11 // pred_check_branch
          %430 = sbr.rel (%p428) target = $region44
        $region43: #{tpu_custom_call.1} parent=11 // pred_region
          _
        $region44: #{tpu_custom_call.1} parent=11 // pred_fallthru
          _
        // Predicated region
        $region45: #{tpu_custom_call.1} parent=11 // pred_check
          %p431 = pneg %p247
        $region46: #{tpu_custom_call.1} parent=11 // pred_check_branch
          %433 = sbr.rel (%p431) target = $region48
        $region47: #{tpu_custom_call.1} parent=11 // pred_region
          %s435 = ssub.s32 1024, 1024
          %436 = vsyncadd [#allocation10], %s435
          %s437 = sshll.u32 [#allocation11], 4
          %s438 = int_to_ptr.vmem [resolvable:$true] %s437
          %443 = dma.hbm_to_vmem [thread:$0]  %s9, 1024, %s438, [#allocation10], 64, 64, 4
        $region48: #{tpu_custom_call.1} parent=11 // pred_fallthru
          _
        // Predicated region
        $region49: #{tpu_custom_call.1} parent=11 // pred_check
          %p444 = pneg %p268
        $region50: #{tpu_custom_call.1} parent=11 // pred_check_branch
          %446 = sbr.rel (%p444) target = $region52
        $region51: #{tpu_custom_call.1} parent=11 // pred_region
          _
        $region52: #{tpu_custom_call.1} parent=11 // pred_fallthru
          _
        // Predicated region
        $region53: #{tpu_custom_call.1} parent=11 // pred_check
          %p447 = pneg %p289
        $region54: #{tpu_custom_call.1} parent=11 // pred_check_branch
          %449 = sbr.rel (%p447) target = $region56
        $region55: #{tpu_custom_call.1} parent=11 // pred_region
          _
        $region56: #{tpu_custom_call.1} parent=11 // pred_fallthru
          _
        // Predicated region
        $region57: #{tpu_custom_call.1} parent=11 // pred_check
          %p450 = pneg %p310
        $region58: #{tpu_custom_call.1} parent=11 // pred_check_branch
          %452 = sbr.rel (%p450) target = $region60
        $region59: #{tpu_custom_call.1} parent=11 // pred_region
          _
        $region60: #{tpu_custom_call.1} parent=11 // pred_fallthru
          _
      $region12: #{tpu_custom_call.1} parent=5 // pred_fallthru
        _
      %p453 = scmp.lt.s32.totalorder %s32, 2
      // Predicated region
      $region61: #{tpu_custom_call.1} parent=5 // pred_check
        %p454 = pneg %p453
      $region62: #{tpu_custom_call.1} parent=5 // pred_check_branch
        %456 = sbr.rel (%p454) target = $region64
      $region63: #{tpu_custom_call.1} parent=5 // pred_region
        // Predicated region
        $region65: #{tpu_custom_call.1} parent=63 // pred_check
          %p457 = pneg %p52
        $region66: #{tpu_custom_call.1} parent=63 // pred_check_branch
          %459 = sbr.rel (%p457) target = $region68
        $region67: #{tpu_custom_call.1} parent=63 // pred_region
          %s460 = sand.u32 %s42, 1
          %s461 = scalar_lea.sflag [#allocation4], %s460
          %s462 = sand.u32 %s42, 1
          %s463 = smul.addr %s462, 8
          %s464 = scalar_lea.vmem [#allocation3], %s463
          %s466 = ssub.s32 128, 128
          %467 = vsyncadd %s461, %s466
          %s468 = smul.addr %s32, 128
          %s469 = scalar_lea.hbm %s0, %s468
          %s471 = sshll.u32 %s464, 4
          %s472 = int_to_ptr.vmem [resolvable:$true] %s471
          %474 = dma.hbm_to_vmem [thread:$0]  %s469, 128, %s472, %s461
        $region68: #{tpu_custom_call.1} parent=63 // pred_fallthru
          _
      $region64: #{tpu_custom_call.1} parent=5 // pred_fallthru
        _
      %p475 = scmp.le.s32.totalorder 1, %s32
      %p476 = scmp.lt.s32.totalorder %s32, 3
      %p477 = pnand %p475, %p476
      %p478 = pneg %p477
      // Predicated region
      $region69: #{tpu_custom_call.1} parent=5 // pred_check
        _
      $region70: #{tpu_custom_call.1} parent=5 // pred_check_branch
        %480 = sbr.rel (%p477) target = $region72
      $region71: #{tpu_custom_call.1} parent=5 // pred_region
        %s481 = ssub.s32 %s32, 1
        %s482 = sand.u32 %s45, 1
        %s483 = scalar_lea.sflag [#allocation4], %s482
        %s484 = sand.u32 %s45, 1
        %s485 = smul.addr %s484, 8
        %s486 = scalar_lea.vmem [#allocation3], %s485
        // Predicated region
        $region73: #{tpu_custom_call.1} parent=71 // pred_check
          %p487 = pneg %p58
        $region74: #{tpu_custom_call.1} parent=71 // pred_check_branch
          %489 = sbr.rel (%p487) target = $region76
        $region75: #{tpu_custom_call.1} parent=71 // pred_region
          %490 = dma.done %s483, 128
        $region76: #{tpu_custom_call.1} parent=71 // pred_fallthru
          _
        // Predicated region
        $region77: #{tpu_custom_call.1} parent=71 // pred_check
          %p491 = pneg %p79
        $region78: #{tpu_custom_call.1} parent=71 // pred_check_branch
          %493 = sbr.rel (%p491) target = $region80
        $region79: #{tpu_custom_call.1} parent=71 // pred_region
          %494 = dma.done [#allocation7], 3072
        $region80: #{tpu_custom_call.1} parent=71 // pred_fallthru
          _
        // Predicated region
        $region81: #{tpu_custom_call.1} parent=71 // pred_check
          %p495 = pneg %p121
        $region82: #{tpu_custom_call.1} parent=71 // pred_check_branch
          %497 = sbr.rel (%p495) target = $region84
        $region83: #{tpu_custom_call.1} parent=71 // pred_region
          %498 = dma.done [#allocation7], 1024
        $region84: #{tpu_custom_call.1} parent=71 // pred_fallthru
          _
        // Predicated region
        $region85: #{tpu_custom_call.1} parent=71 // pred_check
          %p499 = pneg %p205
        $region86: #{tpu_custom_call.1} parent=71 // pred_check_branch
          %501 = sbr.rel (%p499) target = $region88
        $region87: #{tpu_custom_call.1} parent=71 // pred_region
          %502 = dma.done [#allocation10], 1024
        $region88: #{tpu_custom_call.1} parent=71 // pred_fallthru
          _
        // Predicated region
        $region89: #{tpu_custom_call.1} parent=71 // pred_check
          %p503 = pneg %p247
        $region90: #{tpu_custom_call.1} parent=71 // pred_check_branch
          %505 = sbr.rel (%p503) target = $region92
        $region91: #{tpu_custom_call.1} parent=71 // pred_region
          %506 = dma.done [#allocation10], 1024
        $region92: #{tpu_custom_call.1} parent=71 // pred_fallthru
          _
        %s507 = sand.u32 %s45, 1
        %s508 = scalar_lea.sflag [#allocation4], %s507
        %s509 = sand.u32 %s45, 1
        %s510 = smul.addr %s509, 8
        %s511 = scalar_lea.vmem [#allocation3], %s510
        %p512 = pneg %p58
        %p513 = pneg %p55
        %p514 = pneg %p79
        %p515 = pneg %p76
        %p516 = pneg %p100
        %p517 = pneg %p97
        %p518 = pneg %p121
        %p519 = pneg %p118
        %p520 = pneg %p142
        %p521 = pneg %p139
        %p522 = pneg %p163
        %p523 = pneg %p160
        %p524 = pneg %p184
        %p525 = pneg %p181
        %p526 = pneg %p205
        %p527 = pneg %p202
        %p528 = pneg %p226
        %p529 = pneg %p223
        %p530 = pneg %p247
        %p531 = pneg %p244
        %p532 = pneg %p268
        %p533 = pneg %p265
        %p534 = pneg %p289
        %p535 = pneg %p286
        %p536 = pneg %p310
        %p537 = pneg %p307
        %p538 = pneg %p336
        %p539 = pneg %p333
        %s540 = sand.u32 %s323, 1
        %s541 = scalar_lea.sflag [#allocation5], %s540
        %s542 = sand.u32 %s323, 1
        %s543 = smul.addr %s542, 8
        %s544 = scalar_lea.vmem [#allocation12], %s543
        %p545 = pneg %p362
        %p546 = pneg %p359
        %s547 = sand.u32 %s349, 1
        %s548 = scalar_lea.sflag [#allocation14], %s547
        %s549 = sand.u32 %s349, 1
        %s550 = smul.addr %s549, 8
        %s551 = scalar_lea.vmem [#allocation13], %s550
        %v553 = vld [vmem:[%s486] sm:$0xff]
        %v554 = vpack.c.bf16 %v553, %v553
        %v555 = vlaneseq
        %v556 = vand.u32 %v555, 127
        %vm557 = vcmp.lt.s32.totalorder %v556, 116
        %v558 = vsel %vm557, 1, 0
        %v559 = vcvt.s32.f32 %v558
        %v560 = vld [vmem:[#allocation6] sm:$0xff]
        %v561 = vld [vmem:[#allocation6 + $0x8] sm:$0xf]
        %v562 = vld [vmem:[#allocation6 + $0xc] sm:$0xff]
        %v563 = vld [vmem:[#allocation6 + $0x14] sm:$0xf]
        %v564 = vld [vmem:[#allocation6 + $0x18] sm:$0xff]
        %v565 = vld [vmem:[#allocation6 + $0x20] sm:$0xf]
        %v566 = vld [vmem:[#allocation6 + $0x24] sm:$0xff]
        %v567 = vld [vmem:[#allocation6 + $0x2c] sm:$0xf]
        %v568 = vld [vmem:[#allocation6 + $0x30] sm:$0xff]
        %v569 = vld [vmem:[#allocation6 + $0x38] sm:$0xf]
        %v570 = vld [vmem:[#allocation6 + $0x3c] sm:$0xff]
        %v571 = vld [vmem:[#allocation6 + $0x44] sm:$0xf]
        %v572 = vld [vmem:[#allocation6 + $0x48] sm:$0xff]
        %v573 = vld [vmem:[#allocation6 + $0x50] sm:$0xf]
        %v574 = vld [vmem:[#allocation6 + $0x54] sm:$0xff]
        %v575 = vld [vmem:[#allocation6 + $0x5c] sm:$0xf]
        %v576 = vld [vmem:[#allocation6 + $0x60] sm:$0xff]
        %v577 = vld [vmem:[#allocation6 + $0x68] sm:$0xf]
        %v578 = vld [vmem:[#allocation6 + $0x6c] sm:$0xff]
        %v579 = vld [vmem:[#allocation6 + $0x74] sm:$0xf]
        %v580 = vld [vmem:[#allocation6 + $0x78] sm:$0xff]
        %v581 = vld [vmem:[#allocation6 + $0x80] sm:$0xf]
        %v582 = vld [vmem:[#allocation6 + $0x84] sm:$0xff]
        %v583 = vld [vmem:[#allocation6 + $0x8c] sm:$0xf]
        %v584 = vld [vmem:[#allocation6 + $0x90] sm:$0xff]
        %v585 = vld [vmem:[#allocation6 + $0x98] sm:$0xf]
        %v586 = vld [vmem:[#allocation6 + $0x9c] sm:$0xff]
        %v587 = vld [vmem:[#allocation6 + $0xa4] sm:$0xf]
        %v588 = vld [vmem:[#allocation6 + $0xa8] sm:$0xff]
        %v589 = vld [vmem:[#allocation6 + $0xb0] sm:$0xf]
        %v590 = vld [vmem:[#allocation6 + $0xb4] sm:$0xff]
        %v591 = vld [vmem:[#allocation6 + $0xbc] sm:$0xf]
        %v592 = vld [vmem:[%s2] sm:$0x7]
        %v594 = vlaneseq
        %v595 = vshrl.u32 %v594, 7
        %v596 = vsub.s32 0, %v595
        %v597 = vrot.slane %v592, %v596
        %v598 = vlaneseq
        %v599 = vshrl.u32 %v598, 7
        %v600 = vsub.s32 1, %v599
        %v601 = vrot.slane %v592, %v600
        %v602 = vlaneseq
        %v603 = vshrl.u32 %v602, 7
        %v604 = vsub.s32 2, %v603
        %v605 = vrot.slane %v592, %v604
        %v641 = vunpack.c.l.b16 %v560
        %v642 = vunpack.c.h.b16 %v560
        %v643 = vunpack.c.l.b16 %v561
        %v644 = vunpack.c.l.b16 %v562
        %v645 = vunpack.c.h.b16 %v562
        %v646 = vunpack.c.l.b16 %v563
        %v647 = vunpack.c.l.b16 %v564
        %v648 = vunpack.c.h.b16 %v564
        %v649 = vunpack.c.l.b16 %v565
        %v650 = vunpack.c.l.b16 %v566
        %v651 = vunpack.c.h.b16 %v566
        %v652 = vunpack.c.l.b16 %v567
        %v653 = vunpack.c.l.b16 %v568
        %v654 = vunpack.c.h.b16 %v568
        %v655 = vunpack.c.l.b16 %v569
        %v656 = vunpack.c.l.b16 %v570
        %v657 = vunpack.c.h.b16 %v570
        %v658 = vunpack.c.l.b16 %v571
        %v659 = vunpack.c.l.b16 %v572
        %v660 = vunpack.c.h.b16 %v572
        %v661 = vunpack.c.l.b16 %v573
        %v662 = vunpack.c.l.b16 %v574
        %v663 = vunpack.c.h.b16 %v574
        %v664 = vunpack.c.l.b16 %v575
        %v665 = vunpack.c.l.b16 %v576
        %v666 = vunpack.c.h.b16 %v576
        %v667 = vunpack.c.l.b16 %v577
        %v668 = vunpack.c.l.b16 %v578
        %v669 = vunpack.c.h.b16 %v578
        %v670 = vunpack.c.l.b16 %v579
        %v671 = vunpack.c.l.b16 %v580
        %v672 = vunpack.c.h.b16 %v580
        %v673 = vunpack.c.l.b16 %v581
        %v674 = vunpack.c.l.b16 %v582
        %v675 = vunpack.c.h.b16 %v582
        %v676 = vunpack.c.l.b16 %v583
        %v677 = vunpack.c.l.b16 %v584
        %v678 = vunpack.c.h.b16 %v584
        %v679 = vunpack.c.l.b16 %v585
        %v680 = vunpack.c.l.b16 %v586
        %v681 = vunpack.c.h.b16 %v586
        %v682 = vunpack.c.l.b16 %v587
        %v683 = vunpack.c.l.b16 %v588
        %v684 = vunpack.c.h.b16 %v588
        %v685 = vunpack.c.l.b16 %v589
        %v686 = vunpack.c.l.b16 %v590
        %v687 = vunpack.c.h.b16 %v590
        %v688 = vunpack.c.l.b16 %v591
        %v689 = vpack.c.b16 %v644, %v641
        %v690 = vpack.c.b16 %v645, %v642
        %v691 = vpack.c.b16 %v646, %v643
        %v692 = vpack.c.b16 %v650, %v647
        %v693 = vpack.c.b16 %v651, %v648
        %v694 = vpack.c.b16 %v652, %v649
        %v695 = vpack.c.b16 %v656, %v653
        %v696 = vpack.c.b16 %v657, %v654
        %v697 = vpack.c.b16 %v658, %v655
        %v698 = vpack.c.b16 %v662, %v659
        %v699 = vpack.c.b16 %v663, %v660
        %v700 = vpack.c.b16 %v664, %v661
        %v701 = vpack.c.b16 %v668, %v665
        %v702 = vpack.c.b16 %v669, %v666
        %v703 = vpack.c.b16 %v670, %v667
        %v704 = vpack.c.b16 %v674, %v671
        %v705 = vpack.c.b16 %v675, %v672
        %v706 = vpack.c.b16 %v676, %v673
        %v707 = vpack.c.b16 %v680, %v677
        %v708 = vpack.c.b16 %v681, %v678
        %v709 = vpack.c.b16 %v682, %v679
        %v710 = vpack.c.b16 %v686, %v683
        %v711 = vpack.c.b16 %v687, %v684
        %v712 = vpack.c.b16 %v688, %v685
        %737 = vmatprep.subr.bf16.mxu0 %v711
        %738 = vmatpush1.bf16.msra.mxu0 %v710
        %739 = vmatprep.subr.bf16.mxu0 %v708
        %740 = vmatpush1.bf16.msra.mxu0 %v707
        %741 = vmatprep.subr.bf16.mxu0 %v705
        %742 = vmatpush1.bf16.msra.mxu0 %v704
        %743 = vmatprep.subr.bf16.mxu0 %v702
        %744 = vmatpush1.bf16.msra.mxu0 %v701
        %745 = vmatprep.subr.bf16.mxu0 %v699
        %746 = vmatpush1.bf16.msra.mxu0 %v698
        %747 = vmatprep.subr.bf16.mxu0 %v696
        %748 = vmatpush1.bf16.msra.mxu0 %v695
        %749 = vmatprep.subr.bf16.mxu0 %v693
        %750 = vmatpush1.bf16.msra.mxu0 %v692
        %751 = vmatprep.subr.bf16.mxu0 %v690
        %752 = vmatpush1.bf16.msra.mxu0 %v689
        %753 = vmatprep.subr.bf16.mxu0 0
        %754 = vmatpush2.bf16.msra.mxu0 0
        %755 = vmatprep.subr.bf16.mxu0 0
        %756 = vmatpush2.bf16.msra.mxu0 0
        %757 = vmatprep.subr.bf16.mxu0 0
        %758 = vmatpush2.bf16.msra.mxu0 0
        %759 = vmatprep.subr.bf16.mxu0 0
        %760 = vmatpush2.bf16.msra.mxu0 0
        %761 = vmatprep.subr.bf16.mxu0 0
        %762 = vmatpush2.bf16.msra.mxu0 0
        %763 = vmatprep.subr.bf16.mxu0 0
        %764 = vmatpush2.bf16.msra.mxu0 0
        %765 = vmatprep.subr.bf16.mxu0 0
        %766 = vmatpush2.bf16.msra.mxu0 0
        %767 = vmatprep.subr.bf16.mxu0 0
        %768 = vmatpush2.bf16.msra.mxu0 0
        %769 = vmatprep.mubr.bf16.mxu0 0
        %770 = vmatmul.mubr.bf16.gmra.mxu0 %v554
        %v771 = vpop.f32.mrf.mxu0
        %v772 = vadd.f32 %v597, %v771
        %v773 = vpop.f32.mrf.mxu0
        %v774 = vadd.f32 %v601, %v773
        %v775 = vpop.f32.mrf.mxu0
        %v776 = vpop.f32.mrf.mxu0
        %777 = vdwg.mxu0
        %778 = vmatprep.subr.bf16.mxu0 0
        %779 = vmatpush1.bf16.msra.mxu0 %v712
        %780 = vmatprep.subr.bf16.mxu0 0
        %781 = vmatpush1.bf16.msra.mxu0 %v709
        %782 = vmatprep.subr.bf16.mxu0 0
        %783 = vmatpush1.bf16.msra.mxu0 %v706
        %784 = vmatprep.subr.bf16.mxu0 0
        %785 = vmatpush1.bf16.msra.mxu0 %v703
        %786 = vmatprep.subr.bf16.mxu0 0
        %787 = vmatpush1.bf16.msra.mxu0 %v700
        %788 = vmatprep.subr.bf16.mxu0 0
        %789 = vmatpush1.bf16.msra.mxu0 %v697
        %790 = vmatprep.subr.bf16.mxu0 0
        %791 = vmatpush1.bf16.msra.mxu0 %v694
        %792 = vmatprep.subr.bf16.mxu0 0
        %793 = vmatpush1.bf16.msra.mxu0 %v691
        %794 = vmatprep.subr.bf16.mxu0 0
        %795 = vmatpush2.bf16.msra.mxu0 0
        %796 = vmatprep.subr.bf16.mxu0 0
        %797 = vmatpush2.bf16.msra.mxu0 0
        %798 = vmatprep.subr.bf16.mxu0 0
        %799 = vmatpush2.bf16.msra.mxu0 0
        %800 = vmatprep.subr.bf16.mxu0 0
        %801 = vmatpush2.bf16.msra.mxu0 0
        %802 = vmatprep.subr.bf16.mxu0 0
        %803 = vmatpush2.bf16.msra.mxu0 0
        %804 = vmatprep.subr.bf16.mxu0 0
        %805 = vmatpush2.bf16.msra.mxu0 0
        %806 = vmatprep.subr.bf16.mxu0 0
        %807 = vmatpush2.bf16.msra.mxu0 0
        %808 = vmatprep.subr.bf16.mxu0 0
        %809 = vmatpush2.bf16.msra.mxu0 0
        %810 = vmatprep.mubr.bf16.mxu0 0
        %811 = vmatmul.mubr.bf16.gmra.mxu0 %v554
        %v812 = vpop.f32.mrf.mxu0
        %v813 = vadd.f32 %v605, %v812
        %v814 = vpop.f32.mrf.mxu0
        %v815 = vpop.f32.mrf.mxu0
        %v816 = vpop.f32.mrf.mxu0
        %817 = vdwg.mxu0
        %v818 = vpack.c.bf16 %v772, %v772
        %v819 = vpack.c.bf16 %v774, %v774
        %v820 = vpack.c.bf16 %v813, %v813
        %vm821 = vcmask 261120
        %v823 = vsel %vm821, %v818, 0
        %v826 = vsel %vm821, %v819, 0
        %828 = vmatprep.subr.bf16.mxu0 0
        %829 = vmatpush1.bf16.xpose.msra.mxu0 0
        %830 = vmatprep.subr.bf16.mxu0 0
        %831 = vmatpush1.bf16.xpose.msra.mxu0 0
        %832 = vmatprep.subr.bf16.mxu0 0
        %833 = vmatpush1.bf16.xpose.msra.mxu0 0
        %834 = vmatprep.subr.bf16.mxu0 0
        %835 = vmatpush1.bf16.xpose.msra.mxu0 0
        %836 = vmatprep.subr.bf16.mxu0 0
        %837 = vmatpush1.bf16.xpose.msra.mxu0 0
        %838 = vmatprep.subr.bf16.mxu0 0
        %839 = vmatpush1.bf16.xpose.msra.mxu0 0
        %840 = vmatprep.subr.bf16.mxu0 0
        %841 = vmatpush1.bf16.xpose.msra.mxu0 0
        %842 = vmatprep.subr.bf16.mxu0 0
        %843 = vmatpush1.bf16.xpose.msra.mxu0 %v826
        %844 = vmatprep.subr.bf16.mxu0 0
        %845 = vmatpush2.bf16.xpose.msra.mxu0 0
        %846 = vmatprep.subr.bf16.mxu0 0
        %847 = vmatpush2.bf16.xpose.msra.mxu0 0
        %848 = vmatprep.subr.bf16.mxu0 0
        %849 = vmatpush2.bf16.xpose.msra.mxu0 0
        %850 = vmatprep.subr.bf16.mxu0 0
        %851 = vmatpush2.bf16.xpose.msra.mxu0 0
        %852 = vmatprep.subr.bf16.mxu0 0
        %853 = vmatpush2.bf16.xpose.msra.mxu0 0
        %854 = vmatprep.subr.bf16.mxu0 0
        %855 = vmatpush2.bf16.xpose.msra.mxu0 0
        %856 = vmatprep.subr.bf16.mxu0 0
        %857 = vmatpush2.bf16.xpose.msra.mxu0 0
        %858 = vmatprep.subr.bf16.mxu0 0
        %859 = vmatpush2.bf16.xpose.msra.mxu0 0
        %860 = vmatprep.mubr.bf16.mxu0 0
        %861 = vmatmul.mubr.bf16.gmra.mxu0 %v823
        %v862 = vpop.f32.mrf.mxu0
        %v863 = vadd.f32 0.0, %v862
        %v864 = vpop.f32.mrf.mxu0
        %v865 = vpop.f32.mrf.mxu0
        %v866 = vpop.f32.mrf.mxu0
        %867 = vdwg.mxu0
        %v868 = vmul.f32 %v863, 0.17677669
        %vm869 = vcmask 64512
        %v870 = vsel %vm869, %v868, -inf
        %871 = vmax.xlane.f32.xlu0 %v870
        %v872 = vpop.xlane.xlu0 %871
        %v873 = vsub.f32 %v868, %v872
        %v874 = vmul.f32 %v873, 1.442695
        %v875 = vpow.pop %v874
        %v876 = vsel %vm869, %v875, 0.0
        %877 = vadd.xlane.f32.xlu0 %v876
        %v878 = vpop.xlane.xlu0 %877
        %v879 = vrcp.pop %v878
        %v880 = vmul.f32 %v875, %v879
        %v881 = vpack.c.bf16 %v880, %v880
        %v883 = vsel %vm869, %v881, 0
        %vm885 = vcmask 1043456
        %v887 = vsel %vm885, %v820, 0
        %889 = vmatprep.subr.bf16.mxu0 0
        %890 = vmatpush1.bf16.msra.mxu0 0
        %891 = vmatprep.subr.bf16.mxu0 0
        %892 = vmatpush1.bf16.msra.mxu0 0
        %893 = vmatprep.subr.bf16.mxu0 0
        %894 = vmatpush1.bf16.msra.mxu0 0
        %895 = vmatprep.subr.bf16.mxu0 0
        %896 = vmatpush1.bf16.msra.mxu0 0
        %897 = vmatprep.subr.bf16.mxu0 0
        %898 = vmatpush1.bf16.msra.mxu0 0
        %899 = vmatprep.subr.bf16.mxu0 0
        %900 = vmatpush1.bf16.msra.mxu0 0
        %901 = vmatprep.subr.bf16.mxu0 0
        %902 = vmatpush1.bf16.msra.mxu0 0
        %903 = vmatprep.subr.bf16.mxu0 0
        %904 = vmatpush1.bf16.msra.mxu0 %v887
        %905 = vmatprep.subr.bf16.mxu0 0
        %906 = vmatpush2.bf16.msra.mxu0 0
        %907 = vmatprep.subr.bf16.mxu0 0
        %908 = vmatpush2.bf16.msra.mxu0 0
        %909 = vmatprep.subr.bf16.mxu0 0
        %910 = vmatpush2.bf16.msra.mxu0 0
        %911 = vmatprep.subr.bf16.mxu0 0
        %912 = vmatpush2.bf16.msra.mxu0 0
        %913 = vmatprep.subr.bf16.mxu0 0
        %914 = vmatpush2.bf16.msra.mxu0 0
        %915 = vmatprep.subr.bf16.mxu0 0
        %916 = vmatpush2.bf16.msra.mxu0 0
        %917 = vmatprep.subr.bf16.mxu0 0
        %918 = vmatpush2.bf16.msra.mxu0 0
        %919 = vmatprep.subr.bf16.mxu0 0
        %920 = vmatpush2.bf16.msra.mxu0 0
        %921 = vmatprep.mubr.bf16.mxu0 0
        %922 = vmatmul.mubr.bf16.gmra.mxu0 %v883
        %v923 = vpop.f32.mrf.mxu0
        %v924 = vadd.f32 0.0, %v923
        %v925 = vpop.f32.mrf.mxu0
        %v926 = vpop.f32.mrf.mxu0
        %v927 = vpop.f32.mrf.mxu0
        %928 = vdwg.mxu0
        %929 = vst.msk [vmem:[#allocation2] sm:$0xff] %vm821, %v924
        %931 = vrot.lane.b32.xlu0 %v818, 96
        %v932 = vpop.permute.xlu0 %931
        %934 = vrot.lane.b32.xlu0 %v819, 96
        %v935 = vpop.permute.xlu0 %934
        %v937 = vsel %vm821, %v932, 0
        %v940 = vsel %vm821, %v935, 0
        %942 = vmatprep.subr.bf16.mxu0 0
        %943 = vmatpush1.bf16.xpose.msra.mxu0 0
        %944 = vmatprep.subr.bf16.mxu0 0
        %945 = vmatpush1.bf16.xpose.msra.mxu0 0
        %946 = vmatprep.subr.bf16.mxu0 0
        %947 = vmatpush1.bf16.xpose.msra.mxu0 0
        %948 = vmatprep.subr.bf16.mxu0 0
        %949 = vmatpush1.bf16.xpose.msra.mxu0 0
        %950 = vmatprep.subr.bf16.mxu0 0
        %951 = vmatpush1.bf16.xpose.msra.mxu0 0
        %952 = vmatprep.subr.bf16.mxu0 0
        %953 = vmatpush1.bf16.xpose.msra.mxu0 0
        %954 = vmatprep.subr.bf16.mxu0 0
        %955 = vmatpush1.bf16.xpose.msra.mxu0 0
        %956 = vmatprep.subr.bf16.mxu0 0
        %957 = vmatpush1.bf16.xpose.msra.mxu0 %v940
        %958 = vmatprep.subr.bf16.mxu0 0
        %959 = vmatpush2.bf16.xpose.msra.mxu0 0
        %960 = vmatprep.subr.bf16.mxu0 0
        %961 = vmatpush2.bf16.xpose.msra.mxu0 0
        %962 = vmatprep.subr.bf16.mxu0 0
        %963 = vmatpush2.bf16.xpose.msra.mxu0 0
        %964 = vmatprep.subr.bf16.mxu0 0
        %965 = vmatpush2.bf16.xpose.msra.mxu0 0
        %966 = vmatprep.subr.bf16.mxu0 0
        %967 = vmatpush2.bf16.xpose.msra.mxu0 0
        %968 = vmatprep.subr.bf16.mxu0 0
        %969 = vmatpush2.bf16.xpose.msra.mxu0 0
        %970 = vmatprep.subr.bf16.mxu0 0
        %971 = vmatpush2.bf16.xpose.msra.mxu0 0
        %972 = vmatprep.subr.bf16.mxu0 0
        %973 = vmatpush2.bf16.xpose.msra.mxu0 0
        %974 = vmatprep.mubr.bf16.mxu0 0
        %975 = vmatmul.mubr.bf16.gmra.mxu0 %v937
        %v976 = vpop.f32.mrf.mxu0
        %v977 = vadd.f32 0.0, %v976
        %v978 = vpop.f32.mrf.mxu0
        %v979 = vpop.f32.mrf.mxu0
        %v980 = vpop.f32.mrf.mxu0
        %981 = vdwg.mxu0
        %v982 = vmul.f32 %v977, 0.17677669
        %v983 = vsel %vm869, %v982, -inf
        %984 = vmax.xlane.f32.xlu0 %v983
        %v985 = vpop.xlane.xlu0 %984
        %v986 = vsub.f32 %v982, %v985
        %v987 = vmul.f32 %v986, 1.442695
        %v988 = vpow.pop %v987
        %v989 = vsel %vm869, %v988, 0.0
        %990 = vadd.xlane.f32.xlu0 %v989
        %v991 = vpop.xlane.xlu0 %990
        %v992 = vrcp.pop %v991
        %v993 = vmul.f32 %v988, %v992
        %v994 = vpack.c.bf16 %v993, %v993
        %996 = vrot.lane.b32.xlu0 %v820, 96
        %v997 = vpop.permute.xlu0 %996
        %v999 = vsel %vm869, %v994, 0
        %v1002 = vsel %vm885, %v997, 0
        %1004 = vmatprep.subr.bf16.mxu0 0
        %1005 = vmatpush1.bf16.msra.mxu0 0
        %1006 = vmatprep.subr.bf16.mxu0 0
        %1007 = vmatpush1.bf16.msra.mxu0 0
        %1008 = vmatprep.subr.bf16.mxu0 0
        %1009 = vmatpush1.bf16.msra.mxu0 0
        %1010 = vmatprep.subr.bf16.mxu0 0
        %1011 = vmatpush1.bf16.msra.mxu0 0
        %1012 = vmatprep.subr.bf16.mxu0 0
        %1013 = vmatpush1.bf16.msra.mxu0 0
        %1014 = vmatprep.subr.bf16.mxu0 0
        %1015 = vmatpush1.bf16.msra.mxu0 0
        %1016 = vmatprep.subr.bf16.mxu0 0
        %1017 = vmatpush1.bf16.msra.mxu0 0
        %1018 = vmatprep.subr.bf16.mxu0 0
        %1019 = vmatpush1.bf16.msra.mxu0 %v1002
        %1020 = vmatprep.subr.bf16.mxu0 0
        %1021 = vmatpush2.bf16.msra.mxu0 0
        %1022 = vmatprep.subr.bf16.mxu0 0
        %1023 = vmatpush2.bf16.msra.mxu0 0
        %1024 = vmatprep.subr.bf16.mxu0 0
        %1025 = vmatpush2.bf16.msra.mxu0 0
        %1026 = vmatprep.subr.bf16.mxu0 0
        %1027 = vmatpush2.bf16.msra.mxu0 0
        %1028 = vmatprep.subr.bf16.mxu0 0
        %1029 = vmatpush2.bf16.msra.mxu0 0
        %1030 = vmatprep.subr.bf16.mxu0 0
        %1031 = vmatpush2.bf16.msra.mxu0 0
        %1032 = vmatprep.subr.bf16.mxu0 0
        %1033 = vmatpush2.bf16.msra.mxu0 0
        %1034 = vmatprep.subr.bf16.mxu0 0
        %1035 = vmatpush2.bf16.msra.mxu0 0
        %1036 = vmatprep.mubr.bf16.mxu0 0
        %1037 = vmatmul.mubr.bf16.gmra.mxu0 %v999
        %v1038 = vpop.f32.mrf.mxu0
        %v1039 = vadd.f32 0.0, %v1038
        %v1040 = vpop.f32.mrf.mxu0
        %v1041 = vpop.f32.mrf.mxu0
        %v1042 = vpop.f32.mrf.mxu0
        %1043 = vdwg.mxu0
        %1045 = vrot.lane.b32.xlu0 %v1039, 32
        %v1046 = vpop.permute.xlu0 %1045
        %vm1048 = vcmask 523520
        %1049 = vst.msk [vmem:[#allocation2] sm:$0xff] %vm1048, %v1046
        %1050 = vrot.lane.b32.xlu0 %v818, 64
        %v1051 = vpop.permute.xlu0 %1050
        %1052 = vrot.lane.b32.xlu0 %v819, 64
        %v1053 = vpop.permute.xlu0 %1052
        %v1055 = vsel %vm821, %v1051, 0
        %v1058 = vsel %vm821, %v1053, 0
        %1060 = vmatprep.subr.bf16.mxu0 0
        %1061 = vmatpush1.bf16.xpose.msra.mxu0 0
        %1062 = vmatprep.subr.bf16.mxu0 0
        %1063 = vmatpush1.bf16.xpose.msra.mxu0 0
        %1064 = vmatprep.subr.bf16.mxu0 0
        %1065 = vmatpush1.bf16.xpose.msra.mxu0 0
        %1066 = vmatprep.subr.bf16.mxu0 0
        %1067 = vmatpush1.bf16.xpose.msra.mxu0 0
        %1068 = vmatprep.subr.bf16.mxu0 0
        %1069 = vmatpush1.bf16.xpose.msra.mxu0 0
        %1070 = vmatprep.subr.bf16.mxu0 0
        %1071 = vmatpush1.bf16.xpose.msra.mxu0 0
        %1072 = vmatprep.subr.bf16.mxu0 0
        %1073 = vmatpush1.bf16.xpose.msra.mxu0 0
        %1074 = vmatprep.subr.bf16.mxu0 0
        %1075 = vmatpush1.bf16.xpose.msra.mxu0 %v1058
        %1076 = vmatprep.subr.bf16.mxu0 0
        %1077 = vmatpush2.bf16.xpose.msra.mxu0 0
        %1078 = vmatprep.subr.bf16.mxu0 0
        %1079 = vmatpush2.bf16.xpose.msra.mxu0 0
        %1080 = vmatprep.subr.bf16.mxu0 0
        %1081 = vmatpush2.bf16.xpose.msra.mxu0 0
        %1082 = vmatprep.subr.bf16.mxu0 0
        %1083 = vmatpush2.bf16.xpose.msra.mxu0 0
        %1084 = vmatprep.subr.bf16.mxu0 0
        %1085 = vmatpush2.bf16.xpose.msra.mxu0 0
        %1086 = vmatprep.subr.bf16.mxu0 0
        %1087 = vmatpush2.bf16.xpose.msra.mxu0 0
        %1088 = vmatprep.subr.bf16.mxu0 0
        %1089 = vmatpush2.bf16.xpose.msra.mxu0 0
        %1090 = vmatprep.subr.bf16.mxu0 0
        %1091 = vmatpush2.bf16.xpose.msra.mxu0 0
        %1092 = vmatprep.mubr.bf16.mxu0 0
        %1093 = vmatmul.mubr.bf16.gmra.mxu0 %v1055
        %v1094 = vpop.f32.mrf.mxu0
        %v1095 = vadd.f32 0.0, %v1094
        %v1096 = vpop.f32.mrf.mxu0
        %v1097 = vpop.f32.mrf.mxu0
        %v1098 = vpop.f32.mrf.mxu0
        %1099 = vdwg.mxu0
        %v1100 = vmul.f32 %v1095, 0.17677669
        %v1101 = vsel %vm869, %v1100, -inf
        %1102 = vmax.xlane.f32.xlu0 %v1101
        %v1103 = vpop.xlane.xlu0 %1102
        %v1104 = vsub.f32 %v1100, %v1103
        %v1105 = vmul.f32 %v1104, 1.442695
        %v1106 = vpow.pop %v1105
        %v1107 = vsel %vm869, %v1106, 0.0
        %1108 = vadd.xlane.f32.xlu0 %v1107
        %v1109 = vpop.xlane.xlu0 %1108
        %v1110 = vrcp.pop %v1109
        %v1111 = vmul.f32 %v1106, %v1110
        %v1112 = vpack.c.bf16 %v1111, %v1111
        %1113 = vrot.lane.b32.xlu0 %v820, 64
        %v1114 = vpop.permute.xlu0 %1113
        %v1116 = vsel %vm869, %v1112, 0
        %v1119 = vsel %vm885, %v1114, 0
        %1121 = vmatprep.subr.bf16.mxu0 0
        %1122 = vmatpush1.bf16.msra.mxu0 0
        %1123 = vmatprep.subr.bf16.mxu0 0
        %1124 = vmatpush1.bf16.msra.mxu0 0
        %1125 = vmatprep.subr.bf16.mxu0 0
        %1126 = vmatpush1.bf16.msra.mxu0 0
        %1127 = vmatprep.subr.bf16.mxu0 0
        %1128 = vmatpush1.bf16.msra.mxu0 0
        %1129 = vmatprep.subr.bf16.mxu0 0
        %1130 = vmatpush1.bf16.msra.mxu0 0
        %1131 = vmatprep.subr.bf16.mxu0 0
        %1132 = vmatpush1.bf16.msra.mxu0 0
        %1133 = vmatprep.subr.bf16.mxu0 0
        %1134 = vmatpush1.bf16.msra.mxu0 0
        %1135 = vmatprep.subr.bf16.mxu0 0
        %1136 = vmatpush1.bf16.msra.mxu0 %v1119
        %1137 = vmatprep.subr.bf16.mxu0 0
        %1138 = vmatpush2.bf16.msra.mxu0 0
        %1139 = vmatprep.subr.bf16.mxu0 0
        %1140 = vmatpush2.bf16.msra.mxu0 0
        %1141 = vmatprep.subr.bf16.mxu0 0
        %1142 = vmatpush2.bf16.msra.mxu0 0
        %1143 = vmatprep.subr.bf16.mxu0 0
        %1144 = vmatpush2.bf16.msra.mxu0 0
        %1145 = vmatprep.subr.bf16.mxu0 0
        %1146 = vmatpush2.bf16.msra.mxu0 0
        %1147 = vmatprep.subr.bf16.mxu0 0
        %1148 = vmatpush2.bf16.msra.mxu0 0
        %1149 = vmatprep.subr.bf16.mxu0 0
        %1150 = vmatpush2.bf16.msra.mxu0 0
        %1151 = vmatprep.subr.bf16.mxu0 0
        %1152 = vmatpush2.bf16.msra.mxu0 0
        %1153 = vmatprep.mubr.bf16.mxu0 0
        %1154 = vmatmul.mubr.bf16.gmra.mxu0 %v1116
        %v1155 = vpop.f32.mrf.mxu0
        %v1156 = vadd.f32 0.0, %v1155
        %v1157 = vpop.f32.mrf.mxu0
        %v1158 = vpop.f32.mrf.mxu0
        %v1159 = vpop.f32.mrf.mxu0
        %1160 = vdwg.mxu0
        %1162 = vrot.lane.b32.xlu0 %v1156, 64
        %v1163 = vpop.permute.xlu0 %1162
        %vm1165 = vcmask 785920
        %1166 = vst.msk [vmem:[#allocation2] sm:$0xff] %vm1165, %v1163
        %1167 = vrot.lane.b32.xlu0 %v818, 32
        %v1168 = vpop.permute.xlu0 %1167
        %1169 = vrot.lane.b32.xlu0 %v819, 32
        %v1170 = vpop.permute.xlu0 %1169
        %v1172 = vsel %vm821, %v1168, 0
        %v1175 = vsel %vm821, %v1170, 0
        %1177 = vmatprep.subr.bf16.mxu0 0
        %1178 = vmatpush1.bf16.xpose.msra.mxu0 0
        %1179 = vmatprep.subr.bf16.mxu0 0
        %1180 = vmatpush1.bf16.xpose.msra.mxu0 0
        %1181 = vmatprep.subr.bf16.mxu0 0
        %1182 = vmatpush1.bf16.xpose.msra.mxu0 0
        %1183 = vmatprep.subr.bf16.mxu0 0
        %1184 = vmatpush1.bf16.xpose.msra.mxu0 0
        %1185 = vmatprep.subr.bf16.mxu0 0
        %1186 = vmatpush1.bf16.xpose.msra.mxu0 0
        %1187 = vmatprep.subr.bf16.mxu0 0
        %1188 = vmatpush1.bf16.xpose.msra.mxu0 0
        %1189 = vmatprep.subr.bf16.mxu0 0
        %1190 = vmatpush1.bf16.xpose.msra.mxu0 0
        %1191 = vmatprep.subr.bf16.mxu0 0
        %1192 = vmatpush1.bf16.xpose.msra.mxu0 %v1175
        %1193 = vmatprep.subr.bf16.mxu0 0
        %1194 = vmatpush2.bf16.xpose.msra.mxu0 0
        %1195 = vmatprep.subr.bf16.mxu0 0
        %1196 = vmatpush2.bf16.xpose.msra.mxu0 0
        %1197 = vmatprep.subr.bf16.mxu0 0
        %1198 = vmatpush2.bf16.xpose.msra.mxu0 0
        %1199 = vmatprep.subr.bf16.mxu0 0
        %1200 = vmatpush2.bf16.xpose.msra.mxu0 0
        %1201 = vmatprep.subr.bf16.mxu0 0
        %1202 = vmatpush2.bf16.xpose.msra.mxu0 0
        %1203 = vmatprep.subr.bf16.mxu0 0
        %1204 = vmatpush2.bf16.xpose.msra.mxu0 0
        %1205 = vmatprep.subr.bf16.mxu0 0
        %1206 = vmatpush2.bf16.xpose.msra.mxu0 0
        %1207 = vmatprep.subr.bf16.mxu0 0
        %1208 = vmatpush2.bf16.xpose.msra.mxu0 0
        %1209 = vmatprep.mubr.bf16.mxu0 0
        %1210 = vmatmul.mubr.bf16.gmra.mxu0 %v1172
        %v1211 = vpop.f32.mrf.mxu0
        %v1212 = vadd.f32 0.0, %v1211
        %v1213 = vpop.f32.mrf.mxu0
        %v1214 = vpop.f32.mrf.mxu0
        %v1215 = vpop.f32.mrf.mxu0
        %1216 = vdwg.mxu0
        %v1217 = vmul.f32 %v1212, 0.17677669
        %v1218 = vsel %vm869, %v1217, -inf
        %1219 = vmax.xlane.f32.xlu0 %v1218
        %v1220 = vpop.xlane.xlu0 %1219
        %v1221 = vsub.f32 %v1217, %v1220
        %v1222 = vmul.f32 %v1221, 1.442695
        %v1223 = vpow.pop %v1222
        %v1224 = vsel %vm869, %v1223, 0.0
        %1225 = vadd.xlane.f32.xlu0 %v1224
        %v1226 = vpop.xlane.xlu0 %1225
        %v1227 = vrcp.pop %v1226
        %v1228 = vmul.f32 %v1223, %v1227
        %v1229 = vpack.c.bf16 %v1228, %v1228
        %1230 = vrot.lane.b32.xlu0 %v820, 32
        %v1231 = vpop.permute.xlu0 %1230
        %v1233 = vsel %vm869, %v1229, 0
        %v1236 = vsel %vm885, %v1231, 0
        %1238 = vmatprep.subr.bf16.mxu0 0
        %1239 = vmatpush1.bf16.msra.mxu0 0
        %1240 = vmatprep.subr.bf16.mxu0 0
        %1241 = vmatpush1.bf16.msra.mxu0 0
        %1242 = vmatprep.subr.bf16.mxu0 0
        %1243 = vmatpush1.bf16.msra.mxu0 0
        %1244 = vmatprep.subr.bf16.mxu0 0
        %1245 = vmatpush1.bf16.msra.mxu0 0
        %1246 = vmatprep.subr.bf16.mxu0 0
        %1247 = vmatpush1.bf16.msra.mxu0 0
        %1248 = vmatprep.subr.bf16.mxu0 0
        %1249 = vmatpush1.bf16.msra.mxu0 0
        %1250 = vmatprep.subr.bf16.mxu0 0
        %1251 = vmatpush1.bf16.msra.mxu0 0
        %1252 = vmatprep.subr.bf16.mxu0 0
        %1253 = vmatpush1.bf16.msra.mxu0 %v1236
        %1254 = vmatprep.subr.bf16.mxu0 0
        %1255 = vmatpush2.bf16.msra.mxu0 0
        %1256 = vmatprep.subr.bf16.mxu0 0
        %1257 = vmatpush2.bf16.msra.mxu0 0
        %1258 = vmatprep.subr.bf16.mxu0 0
        %1259 = vmatpush2.bf16.msra.mxu0 0
        %1260 = vmatprep.subr.bf16.mxu0 0
        %1261 = vmatpush2.bf16.msra.mxu0 0
        %1262 = vmatprep.subr.bf16.mxu0 0
        %1263 = vmatpush2.bf16.msra.mxu0 0
        %1264 = vmatprep.subr.bf16.mxu0 0
        %1265 = vmatpush2.bf16.msra.mxu0 0
        %1266 = vmatprep.subr.bf16.mxu0 0
        %1267 = vmatpush2.bf16.msra.mxu0 0
        %1268 = vmatprep.subr.bf16.mxu0 0
        %1269 = vmatpush2.bf16.msra.mxu0 0
        %1270 = vmatprep.mubr.bf16.mxu0 0
        %1271 = vmatmul.mubr.bf16.gmra.mxu0 %v1233
        %v1272 = vpop.f32.mrf.mxu0
        %v1273 = vadd.f32 0.0, %v1272
        %v1274 = vpop.f32.mrf.mxu0
        %v1275 = vpop.f32.mrf.mxu0
        %v1276 = vpop.f32.mrf.mxu0
        %1277 = vdwg.mxu0
        %1279 = vrot.lane.b32.xlu0 %v1273, 96
        %v1280 = vpop.permute.xlu0 %1279
        %vm1282 = vcmask 1048320
        %1283 = vst.msk [vmem:[#allocation2] sm:$0xff] %vm1282, %v1280
        %1285 = vrot.lane.b32.xlu0 %v993, 8
        %v1286 = vpop.permute.xlu0 %1285
        %1289 = vrot.lane.b32.xlu0 %v1111, 16
        %v1290 = vpop.permute.xlu0 %1289
        %1293 = vrot.lane.b32.xlu0 %v1228, 24
        %v1294 = vpop.permute.xlu0 %1293
        %v1296 = vsel %vm869, %v880, %v1286
        %vm1297 = vcmask 130048
        %v1298 = vsel %vm1297, %v1296, %v1290
        %vm1299 = vcmask 195584
        %v1300 = vsel %vm1299, %v1298, %v1294
        %1301 = vst.msk [vmem:[%s551] sm:$0xff] %vm821, %v1300
        %v1302 = vld [vmem:[#allocation2] sm:$0xff]
        %v1303 = vpack.c.bf16 %v1302, %v1302
        %v1304 = vld [vmem:[#allocation8] sm:$0xf]
        %v1305 = vld [vmem:[#allocation8 + $0x4] sm:$0xf]
        %v1306 = vld [vmem:[#allocation8 + $0x8] sm:$0xf]
        %v1307 = vld [vmem:[#allocation8 + $0xc] sm:$0xf]
        %v1308 = vld [vmem:[#allocation8 + $0x10] sm:$0xf]
        %v1309 = vld [vmem:[#allocation8 + $0x14] sm:$0xf]
        %v1310 = vld [vmem:[#allocation8 + $0x18] sm:$0xf]
        %v1311 = vld [vmem:[#allocation8 + $0x1c] sm:$0xf]
        %v1312 = vld [vmem:[#allocation8 + $0x20] sm:$0xf]
        %v1313 = vld [vmem:[#allocation8 + $0x24] sm:$0xf]
        %v1314 = vld [vmem:[#allocation8 + $0x28] sm:$0xf]
        %v1315 = vld [vmem:[#allocation8 + $0x2c] sm:$0xf]
        %v1316 = vld [vmem:[#allocation8 + $0x30] sm:$0xf]
        %v1317 = vld [vmem:[#allocation8 + $0x34] sm:$0xf]
        %v1318 = vld [vmem:[#allocation8 + $0x38] sm:$0xf]
        %v1319 = vld [vmem:[#allocation8 + $0x3c] sm:$0xf]
        %v1320 = vld [vmem:[%s4] sm:$0x1]
        %v1322 = vlaneseq
        %v1323 = vshrl.u32 %v1322, 7
        %v1324 = vsub.s32 0, %v1323
        %v1325 = vrot.slane %v1320, %v1324
        %v1343 = vunpack.c.l.b16 %v1304
        %v1344 = vunpack.c.l.b16 %v1305
        %v1345 = vunpack.c.l.b16 %v1306
        %v1346 = vunpack.c.l.b16 %v1307
        %v1347 = vunpack.c.l.b16 %v1308
        %v1348 = vunpack.c.l.b16 %v1309
        %v1349 = vunpack.c.l.b16 %v1310
        %v1350 = vunpack.c.l.b16 %v1311
        %v1351 = vunpack.c.l.b16 %v1312
        %v1352 = vunpack.c.l.b16 %v1313
        %v1353 = vunpack.c.l.b16 %v1314
        %v1354 = vunpack.c.l.b16 %v1315
        %v1355 = vunpack.c.l.b16 %v1316
        %v1356 = vunpack.c.l.b16 %v1317
        %v1357 = vunpack.c.l.b16 %v1318
        %v1358 = vunpack.c.l.b16 %v1319
        %v1359 = vpack.c.b16 %v1344, %v1343
        %v1360 = vpack.c.b16 %v1346, %v1345
        %v1361 = vpack.c.b16 %v1348, %v1347
        %v1362 = vpack.c.b16 %v1350, %v1349
        %v1363 = vpack.c.b16 %v1352, %v1351
        %v1364 = vpack.c.b16 %v1354, %v1353
        %v1365 = vpack.c.b16 %v1356, %v1355
        %v1366 = vpack.c.b16 %v1358, %v1357
        %1375 = vmatprep.subr.bf16.mxu0 0
        %1376 = vmatpush1.bf16.msra.mxu0 %v1366
        %1377 = vmatprep.subr.bf16.mxu0 0
        %1378 = vmatpush1.bf16.msra.mxu0 %v1365
        %1379 = vmatprep.subr.bf16.mxu0 0
        %1380 = vmatpush1.bf16.msra.mxu0 %v1364
        %1381 = vmatprep.subr.bf16.mxu0 0
        %1382 = vmatpush1.bf16.msra.mxu0 %v1363
        %1383 = vmatprep.subr.bf16.mxu0 0
        %1384 = vmatpush1.bf16.msra.mxu0 %v1362
        %1385 = vmatprep.subr.bf16.mxu0 0
        %1386 = vmatpush1.bf16.msra.mxu0 %v1361
        %1387 = vmatprep.subr.bf16.mxu0 0
        %1388 = vmatpush1.bf16.msra.mxu0 %v1360
        %1389 = vmatprep.subr.bf16.mxu0 0
        %1390 = vmatpush1.bf16.msra.mxu0 %v1359
        %1391 = vmatprep.subr.bf16.mxu0 0
        %1392 = vmatpush2.bf16.msra.mxu0 0
        %1393 = vmatprep.subr.bf16.mxu0 0
        %1394 = vmatpush2.bf16.msra.mxu0 0
        %1395 = vmatprep.subr.bf16.mxu0 0
        %1396 = vmatpush2.bf16.msra.mxu0 0
        %1397 = vmatprep.subr.bf16.mxu0 0
        %1398 = vmatpush2.bf16.msra.mxu0 0
        %1399 = vmatprep.subr.bf16.mxu0 0
        %1400 = vmatpush2.bf16.msra.mxu0 0
        %1401 = vmatprep.subr.bf16.mxu0 0
        %1402 = vmatpush2.bf16.msra.mxu0 0
        %1403 = vmatprep.subr.bf16.mxu0 0
        %1404 = vmatpush2.bf16.msra.mxu0 0
        %1405 = vmatprep.subr.bf16.mxu0 0
        %1406 = vmatpush2.bf16.msra.mxu0 0
        %1407 = vmatprep.mubr.bf16.mxu0 0
        %1408 = vmatmul.mubr.bf16.gmra.mxu0 %v1303
        %v1409 = vpop.f32.mrf.mxu0
        %v1410 = vadd.f32 %v1325, %v1409
        %v1411 = vpop.f32.mrf.mxu0
        %v1412 = vpop.f32.mrf.mxu0
        %v1413 = vpop.f32.mrf.mxu0
        %1414 = vdwg.mxu0
        %v1415 = vadd.f32 %v1410, %v553
        %v1416 = vld [vmem:[%s5] sm:$0x1]
        %v1417 = vld [vmem:[%s6] sm:$0x1]
        %1418 = vadd.xlane.f32.xlu0 %v1415
        %v1419 = vpop.xlane.xlu0 %1418
        %v1420 = vmul.f32 %v1419, 0.00862069
        %v1421 = vsub.f32 %v1415, %v1420
        %v1422 = vmul.f32 %v1421, %v559
        %v1423 = vmul.f32 %v1422, %v1422
        %1424 = vadd.xlane.f32.xlu0 %v1423
        %v1425 = vpop.xlane.xlu0 %1424
        %v1426 = vmul.f32 %v1425, 0.00862069
        %v1427 = vadd.f32 %v1426, 1e-05
        %v1428 = vrsqrt.pop %v1427
        %v1429 = vmul.f32 %v1422, %v1428
        %v1431 = vlaneseq
        %v1432 = vshrl.u32 %v1431, 7
        %v1433 = vsub.s32 0, %v1432
        %v1434 = vrot.slane %v1416, %v1433
        %v1436 = vmul.f32 %v1429, %v1434
        %v1438 = vlaneseq
        %v1439 = vshrl.u32 %v1438, 7
        %v1440 = vsub.s32 0, %v1439
        %v1441 = vrot.slane %v1417, %v1440
        %v1443 = vadd.f32 %v1436, %v1441
        %v1444 = vpack.c.bf16 %v1443, %v1443
        %v1445 = vld [vmem:[#allocation9] sm:$0xf]
        %v1446 = vld [vmem:[#allocation9 + $0x4] sm:$0xf]
        %v1447 = vld [vmem:[#allocation9 + $0x8] sm:$0xf]
        %v1448 = vld [vmem:[#allocation9 + $0xc] sm:$0xf]
        %v1449 = vld [vmem:[#allocation9 + $0x10] sm:$0xf]
        %v1450 = vld [vmem:[#allocation9 + $0x14] sm:$0xf]
        %v1451 = vld [vmem:[#allocation9 + $0x18] sm:$0xf]
        %v1452 = vld [vmem:[#allocation9 + $0x1c] sm:$0xf]
        %v1453 = vld [vmem:[#allocation9 + $0x20] sm:$0xf]
        %v1454 = vld [vmem:[#allocation9 + $0x24] sm:$0xf]
        %v1455 = vld [vmem:[#allocation9 + $0x28] sm:$0xf]
        %v1456 = vld [vmem:[#allocation9 + $0x2c] sm:$0xf]
        %v1457 = vld [vmem:[#allocation9 + $0x30] sm:$0xf]
        %v1458 = vld [vmem:[#allocation9 + $0x34] sm:$0xf]
        %v1459 = vld [vmem:[#allocation9 + $0x38] sm:$0xf]
        %v1460 = vld [vmem:[#allocation9 + $0x3c] sm:$0xf]
        %v1461 = vld [vmem:[%s8] sm:$0x1]
        %v1463 = vlaneseq
        %v1464 = vshrl.u32 %v1463, 7
        %v1465 = vsub.s32 0, %v1464
        %v1466 = vrot.slane %v1461, %v1465
        %v1484 = vunpack.c.l.b16 %v1445
        %v1485 = vunpack.c.l.b16 %v1446
        %v1486 = vunpack.c.l.b16 %v1447
        %v1487 = vunpack.c.l.b16 %v1448
        %v1488 = vunpack.c.l.b16 %v1449
        %v1489 = vunpack.c.l.b16 %v1450
        %v1490 = vunpack.c.l.b16 %v1451
        %v1491 = vunpack.c.l.b16 %v1452
        %v1492 = vunpack.c.l.b16 %v1453
        %v1493 = vunpack.c.l.b16 %v1454
        %v1494 = vunpack.c.l.b16 %v1455
        %v1495 = vunpack.c.l.b16 %v1456
        %v1496 = vunpack.c.l.b16 %v1457
        %v1497 = vunpack.c.l.b16 %v1458
        %v1498 = vunpack.c.l.b16 %v1459
        %v1499 = vunpack.c.l.b16 %v1460
        %v1500 = vpack.c.b16 %v1485, %v1484
        %v1501 = vpack.c.b16 %v1487, %v1486
        %v1502 = vpack.c.b16 %v1489, %v1488
        %v1503 = vpack.c.b16 %v1491, %v1490
        %v1504 = vpack.c.b16 %v1493, %v1492
        %v1505 = vpack.c.b16 %v1495, %v1494
        %v1506 = vpack.c.b16 %v1497, %v1496
        %v1507 = vpack.c.b16 %v1499, %v1498
        %1516 = vmatprep.subr.bf16.mxu0 0
        %1517 = vmatpush1.bf16.msra.mxu0 %v1507
        %1518 = vmatprep.subr.bf16.mxu0 0
        %1519 = vmatpush1.bf16.msra.mxu0 %v1506
        %1520 = vmatprep.subr.bf16.mxu0 0
        %1521 = vmatpush1.bf16.msra.mxu0 %v1505
        %1522 = vmatprep.subr.bf16.mxu0 0
        %1523 = vmatpush1.bf16.msra.mxu0 %v1504
        %1524 = vmatprep.subr.bf16.mxu0 0
        %1525 = vmatpush1.bf16.msra.mxu0 %v1503
        %1526 = vmatprep.subr.bf16.mxu0 0
        %1527 = vmatpush1.bf16.msra.mxu0 %v1502
        %1528 = vmatprep.subr.bf16.mxu0 0
        %1529 = vmatpush1.bf16.msra.mxu0 %v1501
        %1530 = vmatprep.subr.bf16.mxu0 0
        %1531 = vmatpush1.bf16.msra.mxu0 %v1500
        %1532 = vmatprep.subr.bf16.mxu0 0
        %1533 = vmatpush2.bf16.msra.mxu0 0
        %1534 = vmatprep.subr.bf16.mxu0 0
        %1535 = vmatpush2.bf16.msra.mxu0 0
        %1536 = vmatprep.subr.bf16.mxu0 0
        %1537 = vmatpush2.bf16.msra.mxu0 0
        %1538 = vmatprep.subr.bf16.mxu0 0
        %1539 = vmatpush2.bf16.msra.mxu0 0
        %1540 = vmatprep.subr.bf16.mxu0 0
        %1541 = vmatpush2.bf16.msra.mxu0 0
        %1542 = vmatprep.subr.bf16.mxu0 0
        %1543 = vmatpush2.bf16.msra.mxu0 0
        %1544 = vmatprep.subr.bf16.mxu0 0
        %1545 = vmatpush2.bf16.msra.mxu0 0
        %1546 = vmatprep.subr.bf16.mxu0 0
        %1547 = vmatpush2.bf16.msra.mxu0 0
        %1548 = vmatprep.mubr.bf16.mxu0 0
        %1549 = vmatmul.mubr.bf16.gmra.mxu0 %v1444
        %v1550 = vpop.f32.mrf.mxu0
        %v1551 = vadd.f32 %v1466, %v1550
        %v1552 = vpop.f32.mrf.mxu0
        %v1553 = vpop.f32.mrf.mxu0
        %v1554 = vpop.f32.mrf.mxu0
        %1555 = vdwg.mxu0
        %v1556 = vmax.f32 %v1551, 0.0
        %v1557 = vpack.c.bf16 %v1556, %v1556
        %v1558 = vld [vmem:[#allocation11] sm:$0xf]
        %v1559 = vld [vmem:[#allocation11 + $0x4] sm:$0xf]
        %v1560 = vld [vmem:[#allocation11 + $0x8] sm:$0xf]
        %v1561 = vld [vmem:[#allocation11 + $0xc] sm:$0xf]
        %v1562 = vld [vmem:[#allocation11 + $0x10] sm:$0xf]
        %v1563 = vld [vmem:[#allocation11 + $0x14] sm:$0xf]
        %v1564 = vld [vmem:[#allocation11 + $0x18] sm:$0xf]
        %v1565 = vld [vmem:[#allocation11 + $0x1c] sm:$0xf]
        %v1566 = vld [vmem:[#allocation11 + $0x20] sm:$0xf]
        %v1567 = vld [vmem:[#allocation11 + $0x24] sm:$0xf]
        %v1568 = vld [vmem:[#allocation11 + $0x28] sm:$0xf]
        %v1569 = vld [vmem:[#allocation11 + $0x2c] sm:$0xf]
        %v1570 = vld [vmem:[#allocation11 + $0x30] sm:$0xf]
        %v1571 = vld [vmem:[#allocation11 + $0x34] sm:$0xf]
        %v1572 = vld [vmem:[#allocation11 + $0x38] sm:$0xf]
        %v1573 = vld [vmem:[#allocation11 + $0x3c] sm:$0xf]
        %v1574 = vld [vmem:[%s10] sm:$0x1]
        %v1576 = vlaneseq
        %v1577 = vshrl.u32 %v1576, 7
        %v1578 = vsub.s32 0, %v1577
        %v1579 = vrot.slane %v1574, %v1578
        %v1597 = vunpack.c.l.b16 %v1558
        %v1598 = vunpack.c.l.b16 %v1559
        %v1599 = vunpack.c.l.b16 %v1560
        %v1600 = vunpack.c.l.b16 %v1561
        %v1601 = vunpack.c.l.b16 %v1562
        %v1602 = vunpack.c.l.b16 %v1563
        %v1603 = vunpack.c.l.b16 %v1564
        %v1604 = vunpack.c.l.b16 %v1565
        %v1605 = vunpack.c.l.b16 %v1566
        %v1606 = vunpack.c.l.b16 %v1567
        %v1607 = vunpack.c.l.b16 %v1568
        %v1608 = vunpack.c.l.b16 %v1569
        %v1609 = vunpack.c.l.b16 %v1570
        %v1610 = vunpack.c.l.b16 %v1571
        %v1611 = vunpack.c.l.b16 %v1572
        %v1612 = vunpack.c.l.b16 %v1573
        %v1613 = vpack.c.b16 %v1598, %v1597
        %v1614 = vpack.c.b16 %v1600, %v1599
        %v1615 = vpack.c.b16 %v1602, %v1601
        %v1616 = vpack.c.b16 %v1604, %v1603
        %v1617 = vpack.c.b16 %v1606, %v1605
        %v1618 = vpack.c.b16 %v1608, %v1607
        %v1619 = vpack.c.b16 %v1610, %v1609
        %v1620 = vpack.c.b16 %v1612, %v1611
        %1629 = vmatprep.subr.bf16.mxu0 0
        %1630 = vmatpush1.bf16.msra.mxu0 %v1620
        %1631 = vmatprep.subr.bf16.mxu0 0
        %1632 = vmatpush1.bf16.msra.mxu0 %v1619
        %1633 = vmatprep.subr.bf16.mxu0 0
        %1634 = vmatpush1.bf16.msra.mxu0 %v1618
        %1635 = vmatprep.subr.bf16.mxu0 0
        %1636 = vmatpush1.bf16.msra.mxu0 %v1617
        %1637 = vmatprep.subr.bf16.mxu0 0
        %1638 = vmatpush1.bf16.msra.mxu0 %v1616
        %1639 = vmatprep.subr.bf16.mxu0 0
        %1640 = vmatpush1.bf16.msra.mxu0 %v1615
        %1641 = vmatprep.subr.bf16.mxu0 0
        %1642 = vmatpush1.bf16.msra.mxu0 %v1614
        %1643 = vmatprep.subr.bf16.mxu0 0
        %1644 = vmatpush1.bf16.msra.mxu0 %v1613
        %1645 = vmatprep.subr.bf16.mxu0 0
        %1646 = vmatpush2.bf16.msra.mxu0 0
        %1647 = vmatprep.subr.bf16.mxu0 0
        %1648 = vmatpush2.bf16.msra.mxu0 0
        %1649 = vmatprep.subr.bf16.mxu0 0
        %1650 = vmatpush2.bf16.msra.mxu0 0
        %1651 = vmatprep.subr.bf16.mxu0 0
        %1652 = vmatpush2.bf16.msra.mxu0 0
        %1653 = vmatprep.subr.bf16.mxu0 0
        %1654 = vmatpush2.bf16.msra.mxu0 0
        %1655 = vmatprep.subr.bf16.mxu0 0
        %1656 = vmatpush2.bf16.msra.mxu0 0
        %1657 = vmatprep.subr.bf16.mxu0 0
        %1658 = vmatpush2.bf16.msra.mxu0 0
        %1659 = vmatprep.subr.bf16.mxu0 0
        %1660 = vmatpush2.bf16.msra.mxu0 0
        %1661 = vmatprep.mubr.bf16.mxu0 0
        %1662 = vmatmul.mubr.bf16.gmra.mxu0 %v1557
        %v1663 = vpop.f32.mrf.mxu0
        %v1664 = vadd.f32 %v1579, %v1663
        %v1665 = vpop.f32.mrf.mxu0
        %v1666 = vpop.f32.mrf.mxu0
        %v1667 = vpop.f32.mrf.mxu0
        %1668 = vdwg.mxu0
        %v1669 = vadd.f32 %v1664, %v1443
        %v1670 = vld [vmem:[%s11] sm:$0x1]
        %v1671 = vld [vmem:[%s12] sm:$0x1]
        %1672 = vadd.xlane.f32.xlu0 %v1669
        %v1673 = vpop.xlane.xlu0 %1672
        %v1674 = vmul.f32 %v1673, 0.00862069
        %v1675 = vsub.f32 %v1669, %v1674
        %v1676 = vmul.f32 %v1675, %v559
        %v1677 = vmul.f32 %v1676, %v1676
        %1678 = vadd.xlane.f32.xlu0 %v1677
        %v1679 = vpop.xlane.xlu0 %1678
        %v1680 = vmul.f32 %v1679, 0.00862069
        %v1681 = vadd.f32 %v1680, 1e-05
        %v1682 = vrsqrt.pop %v1681
        %v1683 = vmul.f32 %v1676, %v1682
        %v1685 = vlaneseq
        %v1686 = vshrl.u32 %v1685, 7
        %v1687 = vsub.s32 0, %v1686
        %v1688 = vrot.slane %v1670, %v1687
        %v1690 = vmul.f32 %v1683, %v1688
        %v1692 = vlaneseq
        %v1693 = vshrl.u32 %v1692, 7
        %v1694 = vsub.s32 0, %v1693
        %v1695 = vrot.slane %v1671, %v1694
        %v1697 = vadd.f32 %v1690, %v1695
        %1698 = vst [vmem:[%s544] sm:$0xff] %v1697
        %s1699 = sand.u32 %s323, 1
        %s1700 = scalar_lea.sflag [#allocation5], %s1699
        %s1701 = sand.u32 %s323, 1
        %s1702 = smul.addr %s1701, 8
        %s1703 = scalar_lea.vmem [#allocation12], %s1702
        %s1704 = sand.u32 %s349, 1
        %s1705 = scalar_lea.sflag [#allocation14], %s1704
        %s1706 = sand.u32 %s349, 1
        %s1707 = smul.addr %s1706, 8
        %s1708 = scalar_lea.vmem [#allocation13], %s1707
        // Predicated region
        $region93: #{tpu_custom_call.1} parent=71 // pred_check
          %p1709 = pneg %p333
        $region94: #{tpu_custom_call.1} parent=71 // pred_check_branch
          %1711 = sbr.rel (%p1709) target = $region96
        $region95: #{tpu_custom_call.1} parent=71 // pred_region
          %s1713 = ssub.s32 128, 128
          %1714 = vsyncadd %s1700, %s1713
          %s1715 = smul.addr %s37, 128
          %s1716 = scalar_lea.hbm %s13, %s1715
          %s1718 = sshll.u32 %s1703, 4
          %s1719 = int_to_ptr.vmem [resolvable:$true] %s1718
          %1721 = dma.vmem_to_hbm [thread:$0]  %s1719, 128, %s1716, %s1700
        $region96: #{tpu_custom_call.1} parent=71 // pred_fallthru
          _
        // Predicated region
        $region97: #{tpu_custom_call.1} parent=71 // pred_check
          %p1722 = pneg %p359
        $region98: #{tpu_custom_call.1} parent=71 // pred_check_branch
          %1724 = sbr.rel (%p1722) target = $region100
        $region99: #{tpu_custom_call.1} parent=71 // pred_region
          %s1726 = ssub.s32 128, 128
          %1727 = vsyncadd %s1705, %s1726
          %s1728 = smul.addr %s37, 128
          %s1729 = scalar_lea.hbm %s14, %s1728
          %s1731 = sshll.u32 %s1708, 4
          %s1732 = int_to_ptr.vmem [resolvable:$true] %s1731
          %1734 = dma.vmem_to_hbm [thread:$0]  %s1732, 128, %s1729, %s1705
        $region100: #{tpu_custom_call.1} parent=71 // pred_fallthru
          _
      $region72: #{tpu_custom_call.1} parent=5 // pred_fallthru
        _
      %p1735 = scmp.le.s32.totalorder 2, %s32
      // Predicated region
      $region101: #{tpu_custom_call.1} parent=5 // pred_check
        %p1736 = pneg %p1735
      $region102: #{tpu_custom_call.1} parent=5 // pred_check_branch
        %1738 = sbr.rel (%p1736) target = $region104
      $region103: #{tpu_custom_call.1} parent=5 // pred_region
        %s1739 = ssub.s32 %s32, 2
        // Predicated region
        $region105: #{tpu_custom_call.1} parent=103 // pred_check
          %p1740 = pneg %p339
        $region106: #{tpu_custom_call.1} parent=103 // pred_check_branch
          %1742 = sbr.rel (%p1740) target = $region108
        $region107: #{tpu_custom_call.1} parent=103 // pred_region
          %s1743 = sand.u32 %s324, 1
          %s1744 = scalar_lea.sflag [#allocation5], %s1743
          %s1745 = sand.u32 %s324, 1
          %s1746 = smul.addr %s1745, 8
          %s1747 = scalar_lea.vmem [#allocation12], %s1746
          %1748 = dma.done %s1744, 128
        $region108: #{tpu_custom_call.1} parent=103 // pred_fallthru
          _
        // Predicated region
        $region109: #{tpu_custom_call.1} parent=103 // pred_check
          %p1749 = pneg %p365
        $region110: #{tpu_custom_call.1} parent=103 // pred_check_branch
          %1751 = sbr.rel (%p1749) target = $region112
        $region111: #{tpu_custom_call.1} parent=103 // pred_region
          %s1752 = sand.u32 %s350, 1
          %s1753 = scalar_lea.sflag [#allocation14], %s1752
          %s1754 = sand.u32 %s350, 1
          %s1755 = smul.addr %s1754, 8
          %s1756 = scalar_lea.vmem [#allocation13], %s1755
          %1757 = dma.done %s1753, 128
        $region112: #{tpu_custom_call.1} parent=103 // pred_fallthru
          _
      $region104: #{tpu_custom_call.1} parent=5 // pred_fallthru
        _
    $region6: #{tpu_custom_call.1} parent=1 // loop_footer
      %s36 = sadd.s32 1, %s32
    $region7: #{tpu_custom_call.1} parent=1 // loop_footer_branch
      %31 = sbr.rel target = $region3
    $region8: #{tpu_custom_call.1} parent=1 // loop_exit
      _
    %1758 = vsyncpa [#allocation4], 1
    %s1759 = scalar_lea.sflag [#allocation4], 1
    %1760 = vsyncpa %s1759, 1
    %1761 = vsyncpa [#allocation7], 1
    %1762 = vsyncpa [#allocation10], 1
    %1763 = vsyncpa [#allocation5], 1
    %s1764 = scalar_lea.sflag [#allocation5], 1
    %1765 = vsyncpa %s1764, 1
    %1766 = vsyncpa [#allocation14], 1
    %s1767 = scalar_lea.sflag [#allocation14], 1
    %1768 = vsyncpa %s1767, 1

</llo_original>
